<compile_context>
chip_gen: v5e
topology: v5e:2x2
jax: 0.10.0
libtpu: 0.0.40
codegen_flags: <defaults>
</compile_context>

<pallas_src>
import jax
import jax.numpy as jnp
from jax.experimental import pallas as pl
from jax.experimental.pallas import tpu as pltpu

EPS = 1e-5  # nn.InstanceNorm2d default eps


def _conv3x3_in_fused(x, w, b, *, relu):
    """Reflect-pad(1) + 3x3 conv (3 height-tap matmuls) + bias + InstanceNorm (+ReLU).

    x: (H, W, C) f32 value.
    w: (3, 3C, C) weight in (dy, (dx, c_in), c_out) layout; its dtype is the matmul
       compute dtype (bf16 for the fast path).
    b: (1, C) f32 bias.
    Returns (H, W, C) f32.
    """
    H, W, C = x.shape
    compute_dtype = w.dtype

    # ReflectionPad2d(1) along height: top = row 1, bottom = row H-2 (cheap leading-axis concat).
    xh = jnp.concatenate([x[1:2], x, x[H - 2:H - 1]], axis=0)                 # (H+2, W, C)

    # Width taps (dx = 0, 1, 2) with reflection at the edges, built as W-extent
    # tensors (no (W+2)-sublane intermediate).
    tap0 = jnp.concatenate([xh[:, 1:2, :], xh[:, 0:W - 1, :]], axis=1)        # left neighbor
    tap2 = jnp.concatenate([xh[:, 1:W, :], xh[:, W - 2:W - 1, :]], axis=1)    # right neighbor
    xd = jnp.concatenate([tap0, xh, tap2], axis=-1)                           # (H+2, W, 3C)

    # Flatten rows; height taps become cheap leading-dim slices at multiples of W.
    xf = xd.reshape((H + 2) * W, 3 * C).astype(compute_dtype)

    # 3 accumulated matmuls (K = 3C each), f32 accumulation, bias folded in.
    acc = b  # (1, C) f32, broadcasts against (H*W, C)
    for dy in range(3):
        acc = acc + jnp.dot(xf[dy * W: dy * W + H * W, :], w[dy],
                            preferred_element_type=jnp.float32)               # (H*W, C)

    # InstanceNorm2d(affine=False, biased var), single pass: var = E[x^2] - mean^2,
    # clamped against f32 cancellation.
    inv_hw = jnp.float32(1.0 / (H * W))
    mean = jnp.sum(acc, axis=0, keepdims=True) * inv_hw
    var = jnp.sum(acc * acc, axis=0, keepdims=True) * inv_hw - mean * mean
    var = jnp.maximum(var, 0.0)
    y = (acc - mean) * jax.lax.rsqrt(var + EPS)
    if relu:
        y = jnp.maximum(y, 0.0)
    return y.reshape(H, W, C)


def resnet_block_kernel(x_ref, w1_ref, b1_ref, w2_ref, b2_ref, out_ref):
    """Fused ResnetBlock body for one batch image: out = x + IN(conv(relu(IN(conv(x)))))."""
    x = x_ref[0].astype(jnp.float32)                                          # (H, W, C)
    h = _conv3x3_in_fused(x, w1_ref[...], b1_ref[...], relu=True)
    y = _conv3x3_in_fused(h, w2_ref[...], b2_ref[...], relu=False)
    out_ref[0] = (x + y).astype(out_ref.dtype)


def _vmem_limit_bytes():
    """Generation-aware VMEM cap with ~25% headroom (~48 MiB v7x, ~96 MiB v5e/v6e)."""
    try:
        cap = int(pltpu.get_tpu_info().vmem_capacity_bytes)
        return (cap * 3) // 4
    except Exception:
        return 64 * 1024 * 1024  # conservative fallback


def resnet_block_forward(x_nchw, params, *, compute_dtype=jnp.bfloat16):
    """x_nchw: (N, C, H, W) float32.  Returns (N, C, H, W)."""
    w1, b1, w2, b2 = params          # w: (3, 3C, C) tap layout (f32), b: (1, C)
    N, C, H, W = x_nchw.shape
    assert H >= 2 and W >= 2, "ReflectionPad2d(1) requires H, W >= 2"

    # Ship weights in the MXU compute dtype (halves weight DMA/VMEM bytes for bf16).
    w1 = w1.astype(compute_dtype)
    w2 = w2.astype(compute_dtype)

    # NCHW -> NHWC (channels on lanes).  If stacking many blocks, hoist these
    # transposes to the model entry/exit instead of per-block.
    x = jnp.transpose(x_nchw, (0, 2, 3, 1))

    out = pl.pallas_call(
        resnet_block_kernel,
        out_shape=jax.ShapeDtypeStruct((N, H, W, C), x.dtype),
        grid_spec=pltpu.PrefetchScalarGridSpec(
            num_scalar_prefetch=0,
            grid=(N,),
            in_specs=[
                pl.BlockSpec((1, H, W, C), lambda n: (n, 0, 0, 0)),
                pl.BlockSpec((3, 3 * C, C), lambda n: (0, 0, 0)),
                pl.BlockSpec((1, C), lambda n: (0, 0)),
                pl.BlockSpec((3, 3 * C, C), lambda n: (0, 0, 0)),
                pl.BlockSpec((1, C), lambda n: (0, 0)),
            ],
            out_specs=pl.BlockSpec((1, H, W, C), lambda n: (n, 0, 0, 0)),
        ),
        compiler_params=pltpu.CompilerParams(
            dimension_semantics=("parallel",),
            vmem_limit_bytes=_vmem_limit_bytes(),
        ),
    )(x, w1, b1, w2, b2)

    # NHWC -> NCHW
    return jnp.transpose(out, (0, 3, 1, 2))


def init_params(key, dim):
    """Deterministic synthetic parameters in PyTorch layout."""
    k1, k2, k3, k4 = jax.random.split(key, 4)
    w1 = jax.random.normal(k1, (dim, dim, 3, 3), jnp.float32) * 0.1  # (out_C, in_C, kH, kW)
    b1 = jax.random.normal(k2, (dim,), jnp.float32) * 0.1
    w2 = jax.random.normal(k3, (dim, dim, 3, 3), jnp.float32) * 0.1
    b2 = jax.random.normal(k4, (dim,), jnp.float32) * 0.1
    return (w1, b1, w2, b2)


def prepare_params(pt_params):
    """PyTorch (out_C, in_C, kH, kW) weights -> (3, 3*in_C, out_C) height-tap layout."""
    w1_pt, b1, w2_pt, b2 = pt_params
    C = w1_pt.shape[0]

    def to_taps(w_pt):
        # (out_C, in_C, kH, kW) -> (kH, kW, in_C, out_C) -> (dy, (dx, c_in), c_out)
        return jnp.transpose(w_pt, (2, 3, 1, 0)).reshape(3, 3 * C, C)

    return (to_taps(w1_pt), b1.reshape(1, C), to_taps(w2_pt), b2.reshape(1, C))


def _reference_forward(x_nchw, pt_params):
    """Pure-JAX reference of the PyTorch ResnetBlock forward (for self-check)."""
    w1_pt, b1, w2_pt, b2 = pt_params

    def conv_in(x, w, b):
        xp = jnp.pad(x, ((0, 0), (0, 0), (1, 1), (1, 1)), mode="reflect")
        y = jax.lax.conv_general_dilated(
            xp, w, (1, 1), "VALID",
            dimension_numbers=("NCHW", "OIHW", "NCHW"),
            precision=jax.lax.Precision.HIGHEST)
        y = y + b[None, :, None, None]
        mean = jnp.mean(y, axis=(2, 3), keepdims=True)
        var = jnp.mean((y - mean) ** 2, axis=(2, 3), keepdims=True)
        return (y - mean) * jax.lax.rsqrt(var + EPS)

    h = jnp.maximum(conv_in(x_nchw, w1_pt, b1), 0.0)
    return x_nchw + conv_in(h, w2_pt, b2)


if __name__ == "__main__":
    N, C, H, W = 2, 4, 16, 16
    key = jax.random.PRNGKey(0)
    kx, kp = jax.random.split(key)
    x = jax.random.normal(kx, (N, C, H, W), jnp.float32)
    pt_params = init_params(kp, C)
    params = prepare_params(pt_params)

    ref = jax.block_until_ready(_reference_forward(x, pt_params))

    # Bit-accuracy check: f32-compute path vs the pure-JAX reference.
    out_f32 = jax.block_until_ready(
        resnet_block_forward(x, params, compute_dtype=jnp.float32))
    assert out_f32.shape == (N, C, H, W)
    err_f32 = float(jnp.max(jnp.abs(out_f32 - ref)))
    assert err_f32 < 1e-3, f"f32 path mismatch vs reference: max abs err = {err_f32}"

    # Fast path: bf16 MXU matmuls with f32 accumulation (looser tolerance).
    out_bf16 = jax.block_until_ready(resnet_block_forward(x, params))
    assert out_bf16.shape == (N, C, H, W)
    err_bf16 = float(jnp.max(jnp.abs(out_bf16 - ref)))
    assert err_bf16 < 5e-2, f"bf16 path mismatch vs reference: max abs err = {err_bf16}"

    print("KERNEL_OK")
</pallas_src>

<mosaic_0001>
module attributes {stable_mosaic.version = 11 : i64} {
  func.func @resnet_block_kernel(%arg0: i32, %arg1: memref<1x16x16x4xf32, #tpu.memory_space<vmem>>, %arg2: memref<3x12x4xf32, #tpu.memory_space<vmem>>, %arg3: memref<1x4xf32, #tpu.memory_space<vmem>>, %arg4: memref<3x12x4xf32, #tpu.memory_space<vmem>>, %arg5: memref<1x4xf32, #tpu.memory_space<vmem>>, %arg6: memref<1x16x16x4xf32, #tpu.memory_space<vmem>>) attributes {dimension_semantics = [#tpu.dimension_semantics<parallel>], iteration_bounds = array<i64: 2>, scalar_prefetch = 0 : i64, scratch_operands = 0 : i64, tpu.core_type = #tpu.core_type<tc>, window_params = [{transform_indices = @transform_0, window_bounds = array<i64: 1, 16, 16, 4>}, {pipeline_mode = #tpu.pipeline_mode<synchronous>, transform_indices = @transform_1, window_bounds = array<i64: 3, 12, 4>}, {pipeline_mode = #tpu.pipeline_mode<synchronous>, transform_indices = @transform_2, window_bounds = array<i64: 1, 4>}, {pipeline_mode = #tpu.pipeline_mode<synchronous>, transform_indices = @transform_3, window_bounds = array<i64: 3, 12, 4>}, {pipeline_mode = #tpu.pipeline_mode<synchronous>, transform_indices = @transform_4, window_bounds = array<i64: 1, 4>}, {transform_indices = @transform_5, window_bounds = array<i64: 1, 16, 16, 4>}]} {
    %c0 = arith.constant 0 : index
    %c0_0 = arith.constant 0 : index
    %c0_1 = arith.constant 0 : index
    %c0_2 = arith.constant 0 : index
    %0 = vector.load %arg1[%c0, %c0_0, %c0_1, %c0_2] : memref<1x16x16x4xf32, #tpu.memory_space<vmem>>, vector<1x16x16x4xf32>
    %1 = vector.shape_cast %0 : vector<1x16x16x4xf32> to vector<16x16x4xf32>
    %c0_3 = arith.constant 0 : index
    %c0_4 = arith.constant 0 : index
    %c0_5 = arith.constant 0 : index
    %2 = vector.load %arg2[%c0_3, %c0_4, %c0_5] : memref<3x12x4xf32, #tpu.memory_space<vmem>>, vector<3x12x4xf32>
    %c0_6 = arith.constant 0 : index
    %c0_7 = arith.constant 0 : index
    %3 = vector.load %arg3[%c0_6, %c0_7] : memref<1x4xf32, #tpu.memory_space<vmem>>, vector<1x4xf32>
    %4 = vector.extract_strided_slice %1 {offsets = [1, 0, 0], sizes = [1, 16, 4], strides = [1, 1, 1]} : vector<16x16x4xf32> to vector<1x16x4xf32>
    %5 = vector.extract_strided_slice %1 {offsets = [14, 0, 0], sizes = [1, 16, 4], strides = [1, 1, 1]} : vector<16x16x4xf32> to vector<1x16x4xf32>
    %6 = tpu.concatenate %4, %1, %5 in 0 : vector<1x16x4xf32>, vector<16x16x4xf32>, vector<1x16x4xf32> -> vector<18x16x4xf32>
    %7 = vector.extract_strided_slice %6 {offsets = [0, 1, 0], sizes = [18, 1, 4], strides = [1, 1, 1]} : vector<18x16x4xf32> to vector<18x1x4xf32>
    %8 = vector.extract_strided_slice %6 {offsets = [0, 0, 0], sizes = [18, 15, 4], strides = [1, 1, 1]} : vector<18x16x4xf32> to vector<18x15x4xf32>
    %9 = tpu.concatenate %7, %8 in 1 : vector<18x1x4xf32>, vector<18x15x4xf32> -> vector<18x16x4xf32>
    %10 = vector.extract_strided_slice %6 {offsets = [0, 1, 0], sizes = [18, 15, 4], strides = [1, 1, 1]} : vector<18x16x4xf32> to vector<18x15x4xf32>
    %11 = vector.extract_strided_slice %6 {offsets = [0, 14, 0], sizes = [18, 1, 4], strides = [1, 1, 1]} : vector<18x16x4xf32> to vector<18x1x4xf32>
    %12 = tpu.concatenate %10, %11 in 1 : vector<18x15x4xf32>, vector<18x1x4xf32> -> vector<18x16x4xf32>
    %13 = tpu.concatenate %9, %6, %12 in 2 : vector<18x16x4xf32>, vector<18x16x4xf32>, vector<18x16x4xf32> -> vector<18x16x12xf32>
    %14 = vector.shape_cast %13 : vector<18x16x12xf32> to vector<288x12xf32>
    %15 = vector.extract_strided_slice %14 {offsets = [0, 0], sizes = [256, 12], strides = [1, 1]} : vector<288x12xf32> to vector<256x12xf32>
    %16 = vector.extract_strided_slice %2 {offsets = [0, 0, 0], sizes = [1, 12, 4], strides = [1, 1, 1]} : vector<3x12x4xf32> to vector<1x12x4xf32>
    %17 = vector.shape_cast %16 : vector<1x12x4xf32> to vector<12x4xf32>
    %cst = arith.constant dense<0.000000e+00> : vector<256x4xf32>
    %18 = tpu.matmul %15, %17, %cst {dimension_numbers = #tpu.dot_dimension_numbers<[1], [0], [0], [1], [0, 0, 1, 1], [], []>} : vector<256x12xf32>, vector<12x4xf32>, vector<256x4xf32> -> vector<256x4xf32>
    %19 = vector.broadcast %3 : vector<1x4xf32> to vector<256x4xf32>
    %20 = arith.addf %19, %18 : vector<256x4xf32>
    %21 = vector.extract_strided_slice %14 {offsets = [16, 0], sizes = [256, 12], strides = [1, 1]} : vector<288x12xf32> to vector<256x12xf32>
    %22 = vector.extract_strided_slice %2 {offsets = [1, 0, 0], sizes = [1, 12, 4], strides = [1, 1, 1]} : vector<3x12x4xf32> to vector<1x12x4xf32>
    %23 = vector.shape_cast %22 : vector<1x12x4xf32> to vector<12x4xf32>
    %cst_8 = arith.constant dense<0.000000e+00> : vector<256x4xf32>
    %24 = tpu.matmul %21, %23, %cst_8 {dimension_numbers = #tpu.dot_dimension_numbers<[1], [0], [0], [1], [0, 0, 1, 1], [], []>} : vector<256x12xf32>, vector<12x4xf32>, vector<256x4xf32> -> vector<256x4xf32>
    %25 = arith.addf %20, %24 : vector<256x4xf32>
    %26 = vector.extract_strided_slice %14 {offsets = [32, 0], sizes = [256, 12], strides = [1, 1]} : vector<288x12xf32> to vector<256x12xf32>
    %27 = vector.extract_strided_slice %2 {offsets = [2, 0, 0], sizes = [1, 12, 4], strides = [1, 1, 1]} : vector<3x12x4xf32> to vector<1x12x4xf32>
    %28 = vector.shape_cast %27 : vector<1x12x4xf32> to vector<12x4xf32>
    %cst_9 = arith.constant dense<0.000000e+00> : vector<256x4xf32>
    %29 = tpu.matmul %26, %28, %cst_9 {dimension_numbers = #tpu.dot_dimension_numbers<[1], [0], [0], [1], [0, 0, 1, 1], [], []>} : vector<256x12xf32>, vector<12x4xf32>, vector<256x4xf32> -> vector<256x4xf32>
    %30 = arith.addf %25, %29 : vector<256x4xf32>
    %cst_10 = arith.constant dense<0.000000e+00> : vector<4xf32>
    %31 = vector.multi_reduction <add>, %30, %cst_10 [0] : vector<256x4xf32> to vector<4xf32>
    %32 = vector.shape_cast %31 : vector<4xf32> to vector<1x4xf32>
    %cst_11 = arith.constant 3.906250e-03 : f32
    %33 = vector.broadcast %cst_11 : f32 to vector<1x4xf32>
    %34 = arith.mulf %32, %33 : vector<1x4xf32>
    %35 = arith.mulf %30, %30 : vector<256x4xf32>
    %cst_12 = arith.constant dense<0.000000e+00> : vector<4xf32>
    %36 = vector.multi_reduction <add>, %35, %cst_12 [0] : vector<256x4xf32> to vector<4xf32>
    %37 = vector.shape_cast %36 : vector<4xf32> to vector<1x4xf32>
    %cst_13 = arith.constant 3.906250e-03 : f32
    %38 = vector.broadcast %cst_13 : f32 to vector<1x4xf32>
    %39 = arith.mulf %37, %38 : vector<1x4xf32>
    %40 = arith.mulf %34, %34 : vector<1x4xf32>
    %41 = arith.subf %39, %40 : vector<1x4xf32>
    %cst_14 = arith.constant 0.000000e+00 : f32
    %42 = vector.broadcast %cst_14 : f32 to vector<1x4xf32>
    %43 = arith.maximumf %41, %42 : vector<1x4xf32>
    %44 = vector.broadcast %34 : vector<1x4xf32> to vector<256x4xf32>
    %45 = arith.subf %30, %44 : vector<256x4xf32>
    %cst_15 = arith.constant 9.99999974E-6 : f32
    %46 = vector.broadcast %cst_15 : f32 to vector<1x4xf32>
    %47 = arith.addf %43, %46 : vector<1x4xf32>
    %48 = math.rsqrt %47 : vector<1x4xf32>
    %49 = vector.broadcast %48 : vector<1x4xf32> to vector<256x4xf32>
    %50 = arith.mulf %45, %49 : vector<256x4xf32>
    %cst_16 = arith.constant 0.000000e+00 : f32
    %51 = vector.broadcast %cst_16 : f32 to vector<256x4xf32>
    %52 = arith.maximumf %50, %51 : vector<256x4xf32>
    %53 = vector.shape_cast %52 : vector<256x4xf32> to vector<16x16x4xf32>
    %c0_17 = arith.constant 0 : index
    %c0_18 = arith.constant 0 : index
    %c0_19 = arith.constant 0 : index
    %54 = vector.load %arg4[%c0_17, %c0_18, %c0_19] : memref<3x12x4xf32, #tpu.memory_space<vmem>>, vector<3x12x4xf32>
    %c0_20 = arith.constant 0 : index
    %c0_21 = arith.constant 0 : index
    %55 = vector.load %arg5[%c0_20, %c0_21] : memref<1x4xf32, #tpu.memory_space<vmem>>, vector<1x4xf32>
    %56 = vector.extract_strided_slice %53 {offsets = [1, 0, 0], sizes = [1, 16, 4], strides = [1, 1, 1]} : vector<16x16x4xf32> to vector<1x16x4xf32>
    %57 = vector.extract_strided_slice %53 {offsets = [14, 0, 0], sizes = [1, 16, 4], strides = [1, 1, 1]} : vector<16x16x4xf32> to vector<1x16x4xf32>
    %58 = tpu.concatenate %56, %53, %57 in 0 : vector<1x16x4xf32>, vector<16x16x4xf32>, vector<1x16x4xf32> -> vector<18x16x4xf32>
    %59 = vector.extract_strided_slice %58 {offsets = [0, 1, 0], sizes = [18, 1, 4], strides = [1, 1, 1]} : vector<18x16x4xf32> to vector<18x1x4xf32>
    %60 = vector.extract_strided_slice %58 {offsets = [0, 0, 0], sizes = [18, 15, 4], strides = [1, 1, 1]} : vector<18x16x4xf32> to vector<18x15x4xf32>
    %61 = tpu.concatenate %59, %60 in 1 : vector<18x1x4xf32>, vector<18x15x4xf32> -> vector<18x16x4xf32>
    %62 = vector.extract_strided_slice %58 {offsets = [0, 1, 0], sizes = [18, 15, 4], strides = [1, 1, 1]} : vector<18x16x4xf32> to vector<18x15x4xf32>
    %63 = vector.extract_strided_slice %58 {offsets = [0, 14, 0], sizes = [18, 1, 4], strides = [1, 1, 1]} : vector<18x16x4xf32> to vector<18x1x4xf32>
    %64 = tpu.concatenate %62, %63 in 1 : vector<18x15x4xf32>, vector<18x1x4xf32> -> vector<18x16x4xf32>
    %65 = tpu.concatenate %61, %58, %64 in 2 : vector<18x16x4xf32>, vector<18x16x4xf32>, vector<18x16x4xf32> -> vector<18x16x12xf32>
    %66 = vector.shape_cast %65 : vector<18x16x12xf32> to vector<288x12xf32>
    %67 = vector.extract_strided_slice %66 {offsets = [0, 0], sizes = [256, 12], strides = [1, 1]} : vector<288x12xf32> to vector<256x12xf32>
    %68 = vector.extract_strided_slice %54 {offsets = [0, 0, 0], sizes = [1, 12, 4], strides = [1, 1, 1]} : vector<3x12x4xf32> to vector<1x12x4xf32>
    %69 = vector.shape_cast %68 : vector<1x12x4xf32> to vector<12x4xf32>
    %cst_22 = arith.constant dense<0.000000e+00> : vector<256x4xf32>
    %70 = tpu.matmul %67, %69, %cst_22 {dimension_numbers = #tpu.dot_dimension_numbers<[1], [0], [0], [1], [0, 0, 1, 1], [], []>} : vector<256x12xf32>, vector<12x4xf32>, vector<256x4xf32> -> vector<256x4xf32>
    %71 = vector.broadcast %55 : vector<1x4xf32> to vector<256x4xf32>
    %72 = arith.addf %71, %70 : vector<256x4xf32>
    %73 = vector.extract_strided_slice %66 {offsets = [16, 0], sizes = [256, 12], strides = [1, 1]} : vector<288x12xf32> to vector<256x12xf32>
    %74 = vector.extract_strided_slice %54 {offsets = [1, 0, 0], sizes = [1, 12, 4], strides = [1, 1, 1]} : vector<3x12x4xf32> to vector<1x12x4xf32>
    %75 = vector.shape_cast %74 : vector<1x12x4xf32> to vector<12x4xf32>
    %cst_23 = arith.constant dense<0.000000e+00> : vector<256x4xf32>
    %76 = tpu.matmul %73, %75, %cst_23 {dimension_numbers = #tpu.dot_dimension_numbers<[1], [0], [0], [1], [0, 0, 1, 1], [], []>} : vector<256x12xf32>, vector<12x4xf32>, vector<256x4xf32> -> vector<256x4xf32>
    %77 = arith.addf %72, %76 : vector<256x4xf32>
    %78 = vector.extract_strided_slice %66 {offsets = [32, 0], sizes = [256, 12], strides = [1, 1]} : vector<288x12xf32> to vector<256x12xf32>
    %79 = vector.extract_strided_slice %54 {offsets = [2, 0, 0], sizes = [1, 12, 4], strides = [1, 1, 1]} : vector<3x12x4xf32> to vector<1x12x4xf32>
    %80 = vector.shape_cast %79 : vector<1x12x4xf32> to vector<12x4xf32>
    %cst_24 = arith.constant dense<0.000000e+00> : vector<256x4xf32>
    %81 = tpu.matmul %78, %80, %cst_24 {dimension_numbers = #tpu.dot_dimension_numbers<[1], [0], [0], [1], [0, 0, 1, 1], [], []>} : vector<256x12xf32>, vector<12x4xf32>, vector<256x4xf32> -> vector<256x4xf32>
    %82 = arith.addf %77, %81 : vector<256x4xf32>
    %cst_25 = arith.constant dense<0.000000e+00> : vector<4xf32>
    %83 = vector.multi_reduction <add>, %82, %cst_25 [0] : vector<256x4xf32> to vector<4xf32>
    %84 = vector.shape_cast %83 : vector<4xf32> to vector<1x4xf32>
    %cst_26 = arith.constant 3.906250e-03 : f32
    %85 = vector.broadcast %cst_26 : f32 to vector<1x4xf32>
    %86 = arith.mulf %84, %85 : vector<1x4xf32>
    %87 = arith.mulf %82, %82 : vector<256x4xf32>
    %cst_27 = arith.constant dense<0.000000e+00> : vector<4xf32>
    %88 = vector.multi_reduction <add>, %87, %cst_27 [0] : vector<256x4xf32> to vector<4xf32>
    %89 = vector.shape_cast %88 : vector<4xf32> to vector<1x4xf32>
    %cst_28 = arith.constant 3.906250e-03 : f32
    %90 = vector.broadcast %cst_28 : f32 to vector<1x4xf32>
    %91 = arith.mulf %89, %90 : vector<1x4xf32>
    %92 = arith.mulf %86, %86 : vector<1x4xf32>
    %93 = arith.subf %91, %92 : vector<1x4xf32>
    %cst_29 = arith.constant 0.000000e+00 : f32
    %94 = vector.broadcast %cst_29 : f32 to vector<1x4xf32>
    %95 = arith.maximumf %93, %94 : vector<1x4xf32>
    %96 = vector.broadcast %86 : vector<1x4xf32> to vector<256x4xf32>
    %97 = arith.subf %82, %96 : vector<256x4xf32>
    %cst_30 = arith.constant 9.99999974E-6 : f32
    %98 = vector.broadcast %cst_30 : f32 to vector<1x4xf32>
    %99 = arith.addf %95, %98 : vector<1x4xf32>
    %100 = math.rsqrt %99 : vector<1x4xf32>
    %101 = vector.broadcast %100 : vector<1x4xf32> to vector<256x4xf32>
    %102 = arith.mulf %97, %101 : vector<256x4xf32>
    %103 = vector.shape_cast %102 : vector<256x4xf32> to vector<16x16x4xf32>
    %104 = arith.addf %1, %103 : vector<16x16x4xf32>
    %c0_31 = arith.constant 0 : index
    %c0_32 = arith.constant 0 : index
    %c0_33 = arith.constant 0 : index
    %c0_34 = arith.constant 0 : index
    %105 = vector.load %arg6[%c0_31, %c0_32, %c0_33, %c0_34] : memref<1x16x16x4xf32, #tpu.memory_space<vmem>>, vector<1x16x16x4xf32>
    %106 = vector.shape_cast %105 : vector<1x16x16x4xf32> to vector<16x16x4xf32>
    %107 = vector.shape_cast %104 : vector<16x16x4xf32> to vector<1x16x16x4xf32>
    tpu.vector_store %arg6[%c0_31, %c0_32, %c0_33, %c0_34], %107 {strides = array<i32>} : memref<1x16x16x4xf32, #tpu.memory_space<vmem>>, vector<1x16x16x4xf32>,
    return
  }
  func.func @transform_0(%arg0: i32) -> (i32, i32, i32, i32) {
    %c0_i32 = arith.constant 0 : i32
    %c0_i32_0 = arith.constant 0 : i32
    %c0_i32_1 = arith.constant 0 : i32
    %c0_i32_2 = arith.constant 0 : i32
    return %arg0, %c0_i32, %c0_i32_0, %c0_i32_1 : i32, i32, i32, i32
  }
  func.func @transform_1(%arg0: i32) -> (i32, i32, i32) {
    %c0_i32 = arith.constant 0 : i32
    %c0_i32_0 = arith.constant 0 : i32
    %c0_i32_1 = arith.constant 0 : i32
    %c0_i32_2 = arith.constant 0 : i32
    return %c0_i32, %c0_i32_0, %c0_i32_1 : i32, i32, i32
  }
  func.func @transform_2(%arg0: i32) -> (i32, i32) {
    %c0_i32 = arith.constant 0 : i32
    %c0_i32_0 = arith.constant 0 : i32
    %c0_i32_1 = arith.constant 0 : i32
    return %c0_i32, %c0_i32_0 : i32, i32
  }
  func.func @transform_3(%arg0: i32) -> (i32, i32, i32) {
    %c0_i32 = arith.constant 0 : i32
    %c0_i32_0 = arith.constant 0 : i32
    %c0_i32_1 = arith.constant 0 : i32
    %c0_i32_2 = arith.constant 0 : i32
    return %c0_i32, %c0_i32_0, %c0_i32_1 : i32, i32, i32
  }
  func.func @transform_4(%arg0: i32) -> (i32, i32) {
    %c0_i32 = arith.constant 0 : i32
    %c0_i32_0 = arith.constant 0 : i32
    %c0_i32_1 = arith.constant 0 : i32
    return %c0_i32, %c0_i32_0 : i32, i32
  }
  func.func @transform_5(%arg0: i32) -> (i32, i32, i32, i32) {
    %c0_i32 = arith.constant 0 : i32
    %c0_i32_0 = arith.constant 0 : i32
    %c0_i32_1 = arith.constant 0 : i32
    %c0_i32_2 = arith.constant 0 : i32
    return %arg0, %c0_i32, %c0_i32_0, %c0_i32_1 : i32, i32, i32, i32
  }
}

</mosaic_0001>

<llo_original>
// kernel: tpu_custom_call.1
$region0: #{tpu_custom_call.1}
  #allocation0 [shape = 'u32[]', space=smem, size = 0x4, offset = 0x4, fixed_abs, tag = 'smem constant byte address 0x4 - core index']
  #allocation1 [shape = 'u32[72,128]{1,0:T(1,128)}', space=vmem, size = 0x9000, scoped, tag = 'internal scratch']
  %s0 = inlined_call_operand.vmem [shape: f32[2,16,16,4], index: 0, kind: input, shape index: {}]
  %s1 = inlined_call_operand.vmem [shape: f32[3,12,4], index: 1, kind: input, shape index: {}]
  %s2 = inlined_call_operand.vmem [shape: f32[1,4], index: 2, kind: input, shape index: {}]
  %s3 = inlined_call_operand.vmem [shape: f32[3,12,4], index: 3, kind: input, shape index: {}]
  %s4 = inlined_call_operand.vmem [shape: f32[1,4], index: 4, kind: input, shape index: {}]
  %s5 = inlined_call_operand.vmem [shape: f32[2,16,16,4], index: 5, kind: output, shape index: {}]
  %s6 = sld [smem:[#allocation0]]
  $region53: #{tpu_custom_call.1} parent=0
    _
  %s8 = ssub.s32 1, %s6
  %s9 = scalar_select 0, %s8, %s6
  loop: start=0, step=1, limit=4
  $region2: #{tpu_custom_call.1} parent=0 // loop_pre_header
    _
  $region3: #{tpu_custom_call.1} parent=0 // loop_header
    %s11 = sphi 0, %s15
    %p12 = scmp.ge.s32.totalorder %s11, 4
    %s21 = sphi 0, %s23
    %s24 = sphi 0, %s21
    %s25 = sphi 0, %s24
    %s41 = sphi 0, %s25
    %s45 = sphi 0, %s45
    %s47 = sphi 0, %s45
    %s48 = sphi 0, %s47
    %s62 = sphi 0, %s48
    %s66 = sphi 0, %s66
    %s68 = sphi 0, %s66
    %s69 = sphi 0, %s68
    %s83 = sphi 0, %s69
    %s87 = sphi 0, %s87
    %s89 = sphi 0, %s87
    %s90 = sphi 0, %s89
    %s104 = sphi 0, %s90
    %s108 = sphi 0, %s108
    %s110 = sphi 0, %s108
    %s111 = sphi 0, %s110
    %s125 = sphi 0, %s111
    %s131 = sphi 0, %s133
    %s134 = sphi 0, %s131
    %s135 = sphi 0, %s134
    %s151 = sphi 0, %s135
  $region4: #{tpu_custom_call.1} parent=0 // loop_header_branch
    %14 = sbr.rel (%p12) target = $region8
  $region5: #{tpu_custom_call.1} parent=0 // loop_body
    %s16 = ssub.s32 %s11, 1
    %s17 = ssub.s32 %s11, 2
    %s18 = sadd.s32 %s11, 1
    %s19 = ssub.s32 %s11, %s18
    %p20 = scmp.eq.s32.totalorder %s19, 0
    %s22 = sadd.s32 %s21, 1
    %s23 = scalar_select %p20, %s21, %s22
    %p26 = pneg %p20
    %p27 = scmp.eq.s32.totalorder %s11, 1
    %p28 = por %p26, %p27
    %p29 = scmp.ne.s32.totalorder %s21, %s24
    %p30 = scmp.eq.s32.totalorder %s11, 0
    %p31 = por %p29, %p30
    %p32 = scmp.ne.s32.totalorder %s21, %s24
    %p33 = scmp.eq.s32.totalorder %s16, 1
    %p34 = por %p32, %p33
    %p35 = scmp.ne.s32.totalorder %s24, %s25
    %p36 = scmp.eq.s32.totalorder %s16, 0
    %p37 = por %p35, %p36
    %p38 = scmp.ne.s32.totalorder %s24, %s25
    %p39 = scmp.eq.s32.totalorder %s17, 1
    %p40 = por %p38, %p39
    %p42 = scmp.ne.s32.totalorder %s25, %s41
    %p43 = scmp.eq.s32.totalorder %s17, 0
    %p44 = por %p42, %p43
    %s46 = sadd.s32 %s45, 1
    %p49 = scmp.eq.s32.totalorder %s11, 1
    %p50 = scmp.ne.s32.totalorder %s45, %s47
    %p51 = scmp.eq.s32.totalorder %s11, 0
    %p52 = por %p50, %p51
    %p53 = scmp.ne.s32.totalorder %s45, %s47
    %p54 = scmp.eq.s32.totalorder %s16, 1
    %p55 = por %p53, %p54
    %p56 = scmp.ne.s32.totalorder %s47, %s48
    %p57 = scmp.eq.s32.totalorder %s16, 0
    %p58 = por %p56, %p57
    %p59 = scmp.ne.s32.totalorder %s47, %s48
    %p60 = scmp.eq.s32.totalorder %s17, 1
    %p61 = por %p59, %p60
    %p63 = scmp.ne.s32.totalorder %s48, %s62
    %p64 = scmp.eq.s32.totalorder %s17, 0
    %p65 = por %p63, %p64
    %s67 = sadd.s32 %s66, 1
    %p70 = scmp.eq.s32.totalorder %s11, 1
    %p71 = scmp.ne.s32.totalorder %s66, %s68
    %p72 = scmp.eq.s32.totalorder %s11, 0
    %p73 = por %p71, %p72
    %p74 = scmp.ne.s32.totalorder %s66, %s68
    %p75 = scmp.eq.s32.totalorder %s16, 1
    %p76 = por %p74, %p75
    %p77 = scmp.ne.s32.totalorder %s68, %s69
    %p78 = scmp.eq.s32.totalorder %s16, 0
    %p79 = por %p77, %p78
    %p80 = scmp.ne.s32.totalorder %s68, %s69
    %p81 = scmp.eq.s32.totalorder %s17, 1
    %p82 = por %p80, %p81
    %p84 = scmp.ne.s32.totalorder %s69, %s83
    %p85 = scmp.eq.s32.totalorder %s17, 0
    %p86 = por %p84, %p85
    %s88 = sadd.s32 %s87, 1
    %p91 = scmp.eq.s32.totalorder %s11, 1
    %p92 = scmp.ne.s32.totalorder %s87, %s89
    %p93 = scmp.eq.s32.totalorder %s11, 0
    %p94 = por %p92, %p93
    %p95 = scmp.ne.s32.totalorder %s87, %s89
    %p96 = scmp.eq.s32.totalorder %s16, 1
    %p97 = por %p95, %p96
    %p98 = scmp.ne.s32.totalorder %s89, %s90
    %p99 = scmp.eq.s32.totalorder %s16, 0
    %p100 = por %p98, %p99
    %p101 = scmp.ne.s32.totalorder %s89, %s90
    %p102 = scmp.eq.s32.totalorder %s17, 1
    %p103 = por %p101, %p102
    %p105 = scmp.ne.s32.totalorder %s90, %s104
    %p106 = scmp.eq.s32.totalorder %s17, 0
    %p107 = por %p105, %p106
    %s109 = sadd.s32 %s108, 1
    %p112 = scmp.eq.s32.totalorder %s11, 1
    %p113 = scmp.ne.s32.totalorder %s108, %s110
    %p114 = scmp.eq.s32.totalorder %s11, 0
    %p115 = por %p113, %p114
    %p116 = scmp.ne.s32.totalorder %s108, %s110
    %p117 = scmp.eq.s32.totalorder %s16, 1
    %p118 = por %p116, %p117
    %p119 = scmp.ne.s32.totalorder %s110, %s111
    %p120 = scmp.eq.s32.totalorder %s16, 0
    %p121 = por %p119, %p120
    %p122 = scmp.ne.s32.totalorder %s110, %s111
    %p123 = scmp.eq.s32.totalorder %s17, 1
    %p124 = por %p122, %p123
    %p126 = scmp.ne.s32.totalorder %s111, %s125
    %p127 = scmp.eq.s32.totalorder %s17, 0
    %p128 = por %p126, %p127
    %s129 = ssub.s32 %s11, %s18
    %p130 = scmp.eq.s32.totalorder %s129, 0
    %s132 = sadd.s32 %s131, 1
    %s133 = scalar_select %p130, %s131, %s132
    %p136 = pneg %p130
    %p137 = scmp.eq.s32.totalorder %s11, 1
    %p138 = por %p136, %p137
    %p139 = scmp.ne.s32.totalorder %s131, %s134
    %p140 = scmp.eq.s32.totalorder %s11, 0
    %p141 = por %p139, %p140
    %p142 = scmp.ne.s32.totalorder %s131, %s134
    %p143 = scmp.eq.s32.totalorder %s16, 1
    %p144 = por %p142, %p143
    %p145 = scmp.ne.s32.totalorder %s134, %s135
    %p146 = scmp.eq.s32.totalorder %s16, 0
    %p147 = por %p145, %p146
    %p148 = scmp.ne.s32.totalorder %s134, %s135
    %p149 = scmp.eq.s32.totalorder %s17, 1
    %p150 = por %p148, %p149
    %p152 = scmp.ne.s32.totalorder %s135, %s151
    %p153 = scmp.eq.s32.totalorder %s17, 0
    %p154 = por %p152, %p153
    %p155 = scmp.le.s32.totalorder 1, %s11
    %p156 = scmp.lt.s32.totalorder %s11, 3
    %p157 = pnand %p155, %p156
    %p158 = pneg %p157
    // Predicated region
    $region9: #{tpu_custom_call.1} parent=5 // pred_check
      _
    $region10: #{tpu_custom_call.1} parent=5 // pred_check_branch
      %160 = sbr.rel (%p157) target = $region12
    $region11: #{tpu_custom_call.1} parent=5 // pred_region
      %s161 = ssub.s32 %s11, 1
      // Predicated region
      $region13: #{tpu_custom_call.1} parent=11 // pred_check
        %p162 = pneg %p58
      $region14: #{tpu_custom_call.1} parent=11 // pred_check_branch
        %164 = sbr.rel (%p162) target = $region16
      $region15: #{tpu_custom_call.1} parent=11 // pred_region
        _
      $region16: #{tpu_custom_call.1} parent=11 // pred_fallthru
        _
      // Predicated region
      $region17: #{tpu_custom_call.1} parent=11 // pred_check
        %p165 = pneg %p79
      $region18: #{tpu_custom_call.1} parent=11 // pred_check_branch
        %167 = sbr.rel (%p165) target = $region20
      $region19: #{tpu_custom_call.1} parent=11 // pred_region
        _
      $region20: #{tpu_custom_call.1} parent=11 // pred_fallthru
        _
      // Predicated region
      $region21: #{tpu_custom_call.1} parent=11 // pred_check
        %p168 = pneg %p100
      $region22: #{tpu_custom_call.1} parent=11 // pred_check_branch
        %170 = sbr.rel (%p168) target = $region24
      $region23: #{tpu_custom_call.1} parent=11 // pred_region
        _
      $region24: #{tpu_custom_call.1} parent=11 // pred_fallthru
        _
      // Predicated region
      $region25: #{tpu_custom_call.1} parent=11 // pred_check
        %p171 = pneg %p121
      $region26: #{tpu_custom_call.1} parent=11 // pred_check_branch
        %173 = sbr.rel (%p171) target = $region28
      $region27: #{tpu_custom_call.1} parent=11 // pred_region
        _
      $region28: #{tpu_custom_call.1} parent=11 // pred_fallthru
        _
    $region12: #{tpu_custom_call.1} parent=5 // pred_fallthru
      _
    %p174 = scmp.lt.s32.totalorder %s11, 2
    // Predicated region
    $region29: #{tpu_custom_call.1} parent=5 // pred_check
      %p175 = pneg %p174
    $region30: #{tpu_custom_call.1} parent=5 // pred_check_branch
      %177 = sbr.rel (%p175) target = $region32
    $region31: #{tpu_custom_call.1} parent=5 // pred_region
      // Predicated region
      $region33: #{tpu_custom_call.1} parent=31 // pred_check
        %p178 = pneg %p31
      $region34: #{tpu_custom_call.1} parent=31 // pred_check_branch
        %180 = sbr.rel (%p178) target = $region36
      $region35: #{tpu_custom_call.1} parent=31 // pred_region
        %p181 = scmp.lt.s32.totalorder %s11, 1
        %s182 = scalar_select %p181, %s11, 1
        %s183 = smul.addr %s182, 32
        %s184 = smul.addr %s183, 8
        %s185 = scalar_lea.vmem %s0, %s184
      $region36: #{tpu_custom_call.1} parent=31 // pred_fallthru
        _
    $region32: #{tpu_custom_call.1} parent=5 // pred_fallthru
      _
    %p186 = scmp.le.s32.totalorder 1, %s11
    %p187 = scmp.lt.s32.totalorder %s11, 3
    %p188 = pnand %p186, %p187
    %p189 = pneg %p188
    // Predicated region
    $region37: #{tpu_custom_call.1} parent=5 // pred_check
      _
    $region38: #{tpu_custom_call.1} parent=5 // pred_check_branch
      %191 = sbr.rel (%p188) target = $region40
    $region39: #{tpu_custom_call.1} parent=5 // pred_region
      %s192 = ssub.s32 %s11, 1
      %p193 = scmp.lt.s32.totalorder %s16, 1
      %s194 = scalar_select %p193, %s16, 1
      %s195 = smul.addr %s194, 32
      %s196 = smul.addr %s195, 8
      %s197 = scalar_lea.vmem %s0, %s196
      %p198 = pneg %p37
      %p199 = pneg %p34
      %p200 = pneg %p58
      %p201 = pneg %p55
      %p202 = pneg %p79
      %p203 = pneg %p76
      %p204 = pneg %p100
      %p205 = pneg %p97
      %p206 = pneg %p121
      %p207 = pneg %p118
      %p208 = pneg %p147
      %p209 = pneg %p144
      %p210 = scmp.lt.s32.totalorder %s16, 1
      %s211 = scalar_select %p210, %s16, 1
      %s212 = smul.addr %s211, 32
      %s213 = smul.addr %s212, 8
      %s214 = scalar_lea.vmem %s5, %s213
      %p215 = scmp.lt.s32.totalorder %s16, 1
      %s216 = scalar_select %p215, %s16, 1
      %s217 = smul.addr %s216, 32
      %s218 = smul.addr %s217, 8
      %s219 = scalar_lea.vmem %s0, %s218
      %p220 = scmp.lt.s32.totalorder %s16, 1
      %s221 = scalar_select %p220, %s16, 1
      %s222 = smul.addr %s221, 32
      %s223 = smul.addr %s222, 8
      %s224 = scalar_lea.vmem %s5, %s223
      %v225 = vld [vmem:[%s219] sm:$0xff]
      %v226 = vld [vmem:[%s219 + $0x8] sm:$0xff]
      %v227 = vld [vmem:[%s219 + $0x10] sm:$0xff]
      %v228 = vld [vmem:[%s219 + $0x18] sm:$0xff]
      %v229 = vld [vmem:[%s219 + $0x20] sm:$0xff]
      %v230 = vld [vmem:[%s219 + $0x28] sm:$0xff]
      %v231 = vld [vmem:[%s219 + $0x30] sm:$0xff]
      %v232 = vld [vmem:[%s219 + $0x38] sm:$0xff]
      %v233 = vld [vmem:[%s219 + $0x40] sm:$0xff]
      %v234 = vld [vmem:[%s219 + $0x48] sm:$0xff]
      %v235 = vld [vmem:[%s219 + $0x50] sm:$0xff]
      %v236 = vld [vmem:[%s219 + $0x58] sm:$0xff]
      %v237 = vld [vmem:[%s219 + $0x60] sm:$0xff]
      %v238 = vld [vmem:[%s219 + $0x68] sm:$0xff]
      %v239 = vld [vmem:[%s219 + $0x70] sm:$0xff]
      %v240 = vld [vmem:[%s219 + $0x78] sm:$0xff]
      %v241 = vld [vmem:[%s219 + $0x80] sm:$0xff]
      %v242 = vld [vmem:[%s219 + $0x88] sm:$0xff]
      %v243 = vld [vmem:[%s219 + $0x90] sm:$0xff]
      %v244 = vld [vmem:[%s219 + $0x98] sm:$0xff]
      %v245 = vld [vmem:[%s219 + $0xa0] sm:$0xff]
      %v246 = vld [vmem:[%s219 + $0xa8] sm:$0xff]
      %v247 = vld [vmem:[%s219 + $0xb0] sm:$0xff]
      %v248 = vld [vmem:[%s219 + $0xb8] sm:$0xff]
      %v249 = vld [vmem:[%s219 + $0xc0] sm:$0xff]
      %v250 = vld [vmem:[%s219 + $0xc8] sm:$0xff]
      %v251 = vld [vmem:[%s219 + $0xd0] sm:$0xff]
      %v252 = vld [vmem:[%s219 + $0xd8] sm:$0xff]
      %v253 = vld [vmem:[%s219 + $0xe0] sm:$0xff]
      %v254 = vld [vmem:[%s219 + $0xe8] sm:$0xff]
      %v255 = vld [vmem:[%s219 + $0xf0] sm:$0xff]
      %v256 = vld [vmem:[%s219 + $0xf8] sm:$0xff]
      %v257 = vld [vmem:[%s1] sm:$0xff]
      %v258 = vld [vmem:[%s1 + $0x8] sm:$0xf]
      %v259 = vld [vmem:[%s1 + $0x10] sm:$0xff]
      %v260 = vld [vmem:[%s1 + $0x18] sm:$0xf]
      %v261 = vld [vmem:[%s1 + $0x20] sm:$0xff]
      %v262 = vld [vmem:[%s1 + $0x28] sm:$0xf]
      %v263 = vld [vmem:[%s2] sm:$0x1]
      %v280 = vrot.slane %v227, 1
      %v281 = vrot.slane %v225, 1
      %v282 = vrot.slane %v229, 1
      %v283 = vrot.slane %v231, 1
      %v284 = vrot.slane %v233, 1
      %v285 = vrot.slane %v235, 1
      %v286 = vrot.slane %v237, 1
      %v287 = vrot.slane %v239, 1
      %v288 = vrot.slane %v241, 1
      %v289 = vrot.slane %v243, 1
      %v290 = vrot.slane %v245, 1
      %v291 = vrot.slane %v247, 1
      %v292 = vrot.slane %v249, 1
      %v293 = vrot.slane %v251, 1
      %v294 = vrot.slane %v253, 1
      %v295 = vrot.slane %v255, 1
      %vm328 = vcmask 1040384
      %v329 = vrot.slane %v227, 7
      %v330 = vrot.slane %v228, 7
      %v331 = vsel %vm328, %v329, %v330
      %v332 = vrot.slane %v225, 7
      %v333 = vrot.slane %v226, 7
      %v334 = vsel %vm328, %v332, %v333
      %v335 = vrot.slane %v229, 7
      %v336 = vrot.slane %v230, 7
      %v337 = vsel %vm328, %v335, %v336
      %v338 = vrot.slane %v231, 7
      %v339 = vrot.slane %v232, 7
      %v340 = vsel %vm328, %v338, %v339
      %v341 = vrot.slane %v233, 7
      %v342 = vrot.slane %v234, 7
      %v343 = vsel %vm328, %v341, %v342
      %v344 = vrot.slane %v235, 7
      %v345 = vrot.slane %v236, 7
      %v346 = vsel %vm328, %v344, %v345
      %v347 = vrot.slane %v237, 7
      %v348 = vrot.slane %v238, 7
      %v349 = vsel %vm328, %v347, %v348
      %v350 = vrot.slane %v239, 7
      %v351 = vrot.slane %v240, 7
      %v352 = vsel %vm328, %v350, %v351
      %v353 = vrot.slane %v241, 7
      %v354 = vrot.slane %v242, 7
      %v355 = vsel %vm328, %v353, %v354
      %v356 = vrot.slane %v243, 7
      %v357 = vrot.slane %v244, 7
      %v358 = vsel %vm328, %v356, %v357
      %v359 = vrot.slane %v245, 7
      %v360 = vrot.slane %v246, 7
      %v361 = vsel %vm328, %v359, %v360
      %v362 = vrot.slane %v247, 7
      %v363 = vrot.slane %v248, 7
      %v364 = vsel %vm328, %v362, %v363
      %v365 = vrot.slane %v249, 7
      %v366 = vrot.slane %v250, 7
      %v367 = vsel %vm328, %v365, %v366
      %v368 = vrot.slane %v251, 7
      %v369 = vrot.slane %v252, 7
      %v370 = vsel %vm328, %v368, %v369
      %v371 = vrot.slane %v253, 7
      %v372 = vrot.slane %v254, 7
      %v373 = vsel %vm328, %v371, %v372
      %v374 = vrot.slane %v255, 7
      %v375 = vrot.slane %v256, 7
      %v376 = vsel %vm328, %v374, %v375
      %v409 = vsel %vm328, %v280, %v329
      %v410 = vsel %vm328, %v281, %v332
      %v411 = vsel %vm328, %v282, %v335
      %v412 = vsel %vm328, %v283, %v338
      %v413 = vsel %vm328, %v284, %v341
      %v414 = vsel %vm328, %v285, %v344
      %v415 = vsel %vm328, %v286, %v347
      %v416 = vsel %vm328, %v287, %v350
      %v417 = vsel %vm328, %v288, %v353
      %v418 = vsel %vm328, %v289, %v356
      %v419 = vsel %vm328, %v290, %v359
      %v420 = vsel %vm328, %v291, %v362
      %v421 = vsel %vm328, %v292, %v365
      %v422 = vsel %vm328, %v293, %v368
      %v423 = vsel %vm328, %v294, %v371
      %v424 = vsel %vm328, %v295, %v374
      %vm425 = vcmask 1046528
      %v426 = vrot.slane %v228, 1
      %v427 = vsel %vm425, %v280, %v426
      %v428 = vrot.slane %v226, 1
      %v429 = vsel %vm425, %v281, %v428
      %v430 = vrot.slane %v230, 1
      %v431 = vsel %vm425, %v282, %v430
      %v432 = vrot.slane %v232, 1
      %v433 = vsel %vm425, %v283, %v432
      %v434 = vrot.slane %v234, 1
      %v435 = vsel %vm425, %v284, %v434
      %v436 = vrot.slane %v236, 1
      %v437 = vsel %vm425, %v285, %v436
      %v438 = vrot.slane %v238, 1
      %v439 = vsel %vm425, %v286, %v438
      %v440 = vrot.slane %v240, 1
      %v441 = vsel %vm425, %v287, %v440
      %v442 = vrot.slane %v242, 1
      %v443 = vsel %vm425, %v288, %v442
      %v444 = vrot.slane %v244, 1
      %v445 = vsel %vm425, %v289, %v444
      %v446 = vrot.slane %v246, 1
      %v447 = vsel %vm425, %v290, %v446
      %v448 = vrot.slane %v248, 1
      %v449 = vsel %vm425, %v291, %v448
      %v450 = vrot.slane %v250, 1
      %v451 = vsel %vm425, %v292, %v450
      %v452 = vrot.slane %v252, 1
      %v453 = vsel %vm425, %v293, %v452
      %v454 = vrot.slane %v254, 1
      %v455 = vsel %vm425, %v294, %v454
      %v456 = vrot.slane %v256, 1
      %v457 = vsel %vm425, %v295, %v456
      %v490 = vsel %vm425, %v426, %v330
      %v491 = vsel %vm425, %v428, %v333
      %v492 = vsel %vm425, %v430, %v336
      %v493 = vsel %vm425, %v432, %v339
      %v494 = vsel %vm425, %v434, %v342
      %v495 = vsel %vm425, %v436, %v345
      %v496 = vsel %vm425, %v438, %v348
      %v497 = vsel %vm425, %v440, %v351
      %v498 = vsel %vm425, %v442, %v354
      %v499 = vsel %vm425, %v444, %v357
      %v500 = vsel %vm425, %v446, %v360
      %v501 = vsel %vm425, %v448, %v363
      %v502 = vsel %vm425, %v450, %v366
      %v503 = vsel %vm425, %v452, %v369
      %v504 = vsel %vm425, %v454, %v372
      %v505 = vsel %vm425, %v456, %v375
      %506 = vrot.lane.b32.xlu0 %v227, 4
      %v507 = vpop.permute.xlu0 %506
      %508 = vrot.lane.b32.xlu0 %v228, 4
      %v509 = vpop.permute.xlu0 %508
      %510 = vrot.lane.b32.xlu0 %v225, 4
      %v511 = vpop.permute.xlu0 %510
      %512 = vrot.lane.b32.xlu0 %v226, 4
      %v513 = vpop.permute.xlu0 %512
      %514 = vrot.lane.b32.xlu0 %v229, 4
      %v515 = vpop.permute.xlu0 %514
      %516 = vrot.lane.b32.xlu0 %v230, 4
      %v517 = vpop.permute.xlu0 %516
      %518 = vrot.lane.b32.xlu0 %v231, 4
      %v519 = vpop.permute.xlu0 %518
      %520 = vrot.lane.b32.xlu0 %v232, 4
      %v521 = vpop.permute.xlu0 %520
      %522 = vrot.lane.b32.xlu0 %v233, 4
      %v523 = vpop.permute.xlu0 %522
      %524 = vrot.lane.b32.xlu0 %v234, 4
      %v525 = vpop.permute.xlu0 %524
      %526 = vrot.lane.b32.xlu0 %v235, 4
      %v527 = vpop.permute.xlu0 %526
      %528 = vrot.lane.b32.xlu0 %v236, 4
      %v529 = vpop.permute.xlu0 %528
      %530 = vrot.lane.b32.xlu0 %v237, 4
      %v531 = vpop.permute.xlu0 %530
      %532 = vrot.lane.b32.xlu0 %v238, 4
      %v533 = vpop.permute.xlu0 %532
      %534 = vrot.lane.b32.xlu0 %v239, 4
      %v535 = vpop.permute.xlu0 %534
      %536 = vrot.lane.b32.xlu0 %v240, 4
      %v537 = vpop.permute.xlu0 %536
      %538 = vrot.lane.b32.xlu0 %v241, 4
      %v539 = vpop.permute.xlu0 %538
      %540 = vrot.lane.b32.xlu0 %v242, 4
      %v541 = vpop.permute.xlu0 %540
      %542 = vrot.lane.b32.xlu0 %v243, 4
      %v543 = vpop.permute.xlu0 %542
      %544 = vrot.lane.b32.xlu0 %v244, 4
      %v545 = vpop.permute.xlu0 %544
      %546 = vrot.lane.b32.xlu0 %v245, 4
      %v547 = vpop.permute.xlu0 %546
      %548 = vrot.lane.b32.xlu0 %v246, 4
      %v549 = vpop.permute.xlu0 %548
      %550 = vrot.lane.b32.xlu0 %v247, 4
      %v551 = vpop.permute.xlu0 %550
      %552 = vrot.lane.b32.xlu0 %v248, 4
      %v553 = vpop.permute.xlu0 %552
      %554 = vrot.lane.b32.xlu0 %v249, 4
      %v555 = vpop.permute.xlu0 %554
      %556 = vrot.lane.b32.xlu0 %v250, 4
      %v557 = vpop.permute.xlu0 %556
      %558 = vrot.lane.b32.xlu0 %v251, 4
      %v559 = vpop.permute.xlu0 %558
      %560 = vrot.lane.b32.xlu0 %v252, 4
      %v561 = vpop.permute.xlu0 %560
      %562 = vrot.lane.b32.xlu0 %v253, 4
      %v563 = vpop.permute.xlu0 %562
      %564 = vrot.lane.b32.xlu0 %v254, 4
      %v565 = vpop.permute.xlu0 %564
      %566 = vrot.lane.b32.xlu0 %v255, 4
      %v567 = vpop.permute.xlu0 %566
      %568 = vrot.lane.b32.xlu0 %v256, 4
      %v569 = vpop.permute.xlu0 %568
      %618 = vrot.lane.b32.xlu0 %v427, 8
      %v619 = vpop.permute.xlu0 %618
      %620 = vrot.lane.b32.xlu0 %v490, 8
      %v621 = vpop.permute.xlu0 %620
      %622 = vrot.lane.b32.xlu0 %v429, 8
      %v623 = vpop.permute.xlu0 %622
      %624 = vrot.lane.b32.xlu0 %v491, 8
      %v625 = vpop.permute.xlu0 %624
      %626 = vrot.lane.b32.xlu0 %v431, 8
      %v627 = vpop.permute.xlu0 %626
      %628 = vrot.lane.b32.xlu0 %v492, 8
      %v629 = vpop.permute.xlu0 %628
      %630 = vrot.lane.b32.xlu0 %v433, 8
      %v631 = vpop.permute.xlu0 %630
      %632 = vrot.lane.b32.xlu0 %v493, 8
      %v633 = vpop.permute.xlu0 %632
      %634 = vrot.lane.b32.xlu0 %v435, 8
      %v635 = vpop.permute.xlu0 %634
      %636 = vrot.lane.b32.xlu0 %v494, 8
      %v637 = vpop.permute.xlu0 %636
      %638 = vrot.lane.b32.xlu0 %v437, 8
      %v639 = vpop.permute.xlu0 %638
      %640 = vrot.lane.b32.xlu0 %v495, 8
      %v641 = vpop.permute.xlu0 %640
      %642 = vrot.lane.b32.xlu0 %v439, 8
      %v643 = vpop.permute.xlu0 %642
      %644 = vrot.lane.b32.xlu0 %v496, 8
      %v645 = vpop.permute.xlu0 %644
      %646 = vrot.lane.b32.xlu0 %v441, 8
      %v647 = vpop.permute.xlu0 %646
      %648 = vrot.lane.b32.xlu0 %v497, 8
      %v649 = vpop.permute.xlu0 %648
      %650 = vrot.lane.b32.xlu0 %v443, 8
      %v651 = vpop.permute.xlu0 %650
      %652 = vrot.lane.b32.xlu0 %v498, 8
      %v653 = vpop.permute.xlu0 %652
      %654 = vrot.lane.b32.xlu0 %v445, 8
      %v655 = vpop.permute.xlu0 %654
      %656 = vrot.lane.b32.xlu0 %v499, 8
      %v657 = vpop.permute.xlu0 %656
      %658 = vrot.lane.b32.xlu0 %v447, 8
      %v659 = vpop.permute.xlu0 %658
      %660 = vrot.lane.b32.xlu0 %v500, 8
      %v661 = vpop.permute.xlu0 %660
      %662 = vrot.lane.b32.xlu0 %v449, 8
      %v663 = vpop.permute.xlu0 %662
      %664 = vrot.lane.b32.xlu0 %v501, 8
      %v665 = vpop.permute.xlu0 %664
      %666 = vrot.lane.b32.xlu0 %v451, 8
      %v667 = vpop.permute.xlu0 %666
      %668 = vrot.lane.b32.xlu0 %v502, 8
      %v669 = vpop.permute.xlu0 %668
      %670 = vrot.lane.b32.xlu0 %v453, 8
      %v671 = vpop.permute.xlu0 %670
      %672 = vrot.lane.b32.xlu0 %v503, 8
      %v673 = vpop.permute.xlu0 %672
      %674 = vrot.lane.b32.xlu0 %v455, 8
      %v675 = vpop.permute.xlu0 %674
      %676 = vrot.lane.b32.xlu0 %v504, 8
      %v677 = vpop.permute.xlu0 %676
      %678 = vrot.lane.b32.xlu0 %v457, 8
      %v679 = vpop.permute.xlu0 %678
      %680 = vrot.lane.b32.xlu0 %v505, 8
      %v681 = vpop.permute.xlu0 %680
      %vm714 = vcmask 31744
      %v715 = vsel %vm714, %v409, %v507
      %v716 = vsel %vm714, %v331, %v509
      %v717 = vsel %vm714, %v410, %v511
      %v718 = vsel %vm714, %v334, %v513
      %v719 = vsel %vm714, %v411, %v515
      %v720 = vsel %vm714, %v337, %v517
      %v721 = vsel %vm714, %v412, %v519
      %v722 = vsel %vm714, %v340, %v521
      %v723 = vsel %vm714, %v413, %v523
      %v724 = vsel %vm714, %v343, %v525
      %v725 = vsel %vm714, %v414, %v527
      %v726 = vsel %vm714, %v346, %v529
      %v727 = vsel %vm714, %v415, %v531
      %v728 = vsel %vm714, %v349, %v533
      %v729 = vsel %vm714, %v416, %v535
      %v730 = vsel %vm714, %v352, %v537
      %v731 = vsel %vm714, %v417, %v539
      %v732 = vsel %vm714, %v355, %v541
      %v733 = vsel %vm714, %v418, %v543
      %v734 = vsel %vm714, %v358, %v545
      %v735 = vsel %vm714, %v419, %v547
      %v736 = vsel %vm714, %v361, %v549
      %v737 = vsel %vm714, %v420, %v551
      %v738 = vsel %vm714, %v364, %v553
      %v739 = vsel %vm714, %v421, %v555
      %v740 = vsel %vm714, %v367, %v557
      %v741 = vsel %vm714, %v422, %v559
      %v742 = vsel %vm714, %v370, %v561
      %v743 = vsel %vm714, %v423, %v563
      %v744 = vsel %vm714, %v373, %v565
      %v745 = vsel %vm714, %v424, %v567
      %v746 = vsel %vm714, %v376, %v569
      %vm747 = vcmask 64512
      %v748 = vsel %vm747, %v715, %v619
      %v749 = vsel %vm747, %v716, %v621
      %v750 = vsel %vm747, %v717, %v623
      %v751 = vsel %vm747, %v718, %v625
      %v752 = vsel %vm747, %v719, %v627
      %v753 = vsel %vm747, %v720, %v629
      %v754 = vsel %vm747, %v721, %v631
      %v755 = vsel %vm747, %v722, %v633
      %v756 = vsel %vm747, %v723, %v635
      %v757 = vsel %vm747, %v724, %v637
      %v758 = vsel %vm747, %v725, %v639
      %v759 = vsel %vm747, %v726, %v641
      %v760 = vsel %vm747, %v727, %v643
      %v761 = vsel %vm747, %v728, %v645
      %v762 = vsel %vm747, %v729, %v647
      %v763 = vsel %vm747, %v730, %v649
      %v764 = vsel %vm747, %v731, %v651
      %v765 = vsel %vm747, %v732, %v653
      %v766 = vsel %vm747, %v733, %v655
      %v767 = vsel %vm747, %v734, %v657
      %v768 = vsel %vm747, %v735, %v659
      %v769 = vsel %vm747, %v736, %v661
      %v770 = vsel %vm747, %v737, %v663
      %v771 = vsel %vm747, %v738, %v665
      %v772 = vsel %vm747, %v739, %v667
      %v773 = vsel %vm747, %v740, %v669
      %v774 = vsel %vm747, %v741, %v671
      %v775 = vsel %vm747, %v742, %v673
      %v776 = vsel %vm747, %v743, %v675
      %v777 = vsel %vm747, %v744, %v677
      %v778 = vsel %vm747, %v745, %v679
      %v779 = vsel %vm747, %v746, %v681
      %vm780 = vcmask 97280
      %v782 = vsel %vm780, %v748, 0
      %v785 = vsel %vm780, %v749, 0
      %v788 = vsel %vm780, %v750, 0
      %v791 = vsel %vm780, %v751, 0
      %v794 = vsel %vm780, %v752, 0
      %v797 = vsel %vm780, %v753, 0
      %v800 = vsel %vm780, %v754, 0
      %v803 = vsel %vm780, %v755, 0
      %v806 = vsel %vm780, %v756, 0
      %v809 = vsel %vm780, %v757, 0
      %v812 = vsel %vm780, %v758, 0
      %v815 = vsel %vm780, %v759, 0
      %v818 = vsel %vm780, %v760, 0
      %v821 = vsel %vm780, %v761, 0
      %v824 = vsel %vm780, %v762, 0
      %v827 = vsel %vm780, %v763, 0
      %v830 = vsel %vm780, %v764, 0
      %v833 = vsel %vm780, %v765, 0
      %v836 = vsel %vm780, %v766, 0
      %v839 = vsel %vm780, %v767, 0
      %v842 = vsel %vm780, %v768, 0
      %v845 = vsel %vm780, %v769, 0
      %v848 = vsel %vm780, %v770, 0
      %v851 = vsel %vm780, %v771, 0
      %v854 = vsel %vm780, %v772, 0
      %v857 = vsel %vm780, %v773, 0
      %v860 = vsel %vm780, %v774, 0
      %v863 = vsel %vm780, %v775, 0
      %v866 = vsel %vm780, %v776, 0
      %v869 = vsel %vm780, %v777, 0
      %vm871 = vcmask 1043456
      %v873 = vsel %vm871, %v258, 0
      %875 = vmatpush.msra.mxu0 0.0
      %876 = vmatpush.msra.mxu0 0.0
      %877 = vmatpush.msra.mxu0 0.0
      %878 = vmatpush.msra.mxu0 0.0
      %879 = vmatpush.msra.mxu0 0.0
      %880 = vmatpush.msra.mxu0 0.0
      %881 = vmatpush.msra.mxu0 0.0
      %882 = vmatpush.msra.mxu0 0.0
      %883 = vmatpush.msra.mxu0 0.0
      %884 = vmatpush.msra.mxu0 0.0
      %885 = vmatpush.msra.mxu0 0.0
      %886 = vmatpush.msra.mxu0 0.0
      %887 = vmatpush.msra.mxu0 0.0
      %888 = vmatpush.msra.mxu0 0.0
      %889 = vmatpush.msra.mxu0 %v873
      %890 = vmatpush.msra.mxu0 %v257
      %891 = vmatmul.f32.gmra.mxu0 %v782
      %v892 = vpop.f32.mrf.mxu0
      %v893 = vadd.f32 0.0, %v892
      %894 = vmatmul.f32.gmra.mxu0 %v785
      %v895 = vpop.f32.mrf.mxu0
      %v896 = vadd.f32 0.0, %v895
      %897 = vmatmul.f32.gmra.mxu0 %v788
      %v898 = vpop.f32.mrf.mxu0
      %v899 = vadd.f32 0.0, %v898
      %900 = vmatmul.f32.gmra.mxu0 %v791
      %v901 = vpop.f32.mrf.mxu0
      %v902 = vadd.f32 0.0, %v901
      %903 = vmatmul.f32.gmra.mxu0 %v782
      %v904 = vpop.f32.mrf.mxu0
      %v905 = vadd.f32 0.0, %v904
      %906 = vmatmul.f32.gmra.mxu0 %v785
      %v907 = vpop.f32.mrf.mxu0
      %v908 = vadd.f32 0.0, %v907
      %909 = vmatmul.f32.gmra.mxu0 %v794
      %v910 = vpop.f32.mrf.mxu0
      %v911 = vadd.f32 0.0, %v910
      %912 = vmatmul.f32.gmra.mxu0 %v797
      %v913 = vpop.f32.mrf.mxu0
      %v914 = vadd.f32 0.0, %v913
      %915 = vmatmul.f32.gmra.mxu0 %v800
      %v916 = vpop.f32.mrf.mxu0
      %v917 = vadd.f32 0.0, %v916
      %918 = vmatmul.f32.gmra.mxu0 %v803
      %v919 = vpop.f32.mrf.mxu0
      %v920 = vadd.f32 0.0, %v919
      %921 = vmatmul.f32.gmra.mxu0 %v806
      %v922 = vpop.f32.mrf.mxu0
      %v923 = vadd.f32 0.0, %v922
      %924 = vmatmul.f32.gmra.mxu0 %v809
      %v925 = vpop.f32.mrf.mxu0
      %v926 = vadd.f32 0.0, %v925
      %927 = vmatmul.f32.gmra.mxu0 %v812
      %v928 = vpop.f32.mrf.mxu0
      %v929 = vadd.f32 0.0, %v928
      %930 = vmatmul.f32.gmra.mxu0 %v815
      %v931 = vpop.f32.mrf.mxu0
      %v932 = vadd.f32 0.0, %v931
      %933 = vmatmul.f32.gmra.mxu0 %v818
      %v934 = vpop.f32.mrf.mxu0
      %v935 = vadd.f32 0.0, %v934
      %936 = vmatmul.f32.gmra.mxu0 %v821
      %v937 = vpop.f32.mrf.mxu0
      %v938 = vadd.f32 0.0, %v937
      %939 = vmatmul.f32.gmra.mxu0 %v824
      %v940 = vpop.f32.mrf.mxu0
      %v941 = vadd.f32 0.0, %v940
      %942 = vmatmul.f32.gmra.mxu0 %v827
      %v943 = vpop.f32.mrf.mxu0
      %v944 = vadd.f32 0.0, %v943
      %945 = vmatmul.f32.gmra.mxu0 %v830
      %v946 = vpop.f32.mrf.mxu0
      %v947 = vadd.f32 0.0, %v946
      %948 = vmatmul.f32.gmra.mxu0 %v833
      %v949 = vpop.f32.mrf.mxu0
      %v950 = vadd.f32 0.0, %v949
      %951 = vmatmul.f32.gmra.mxu0 %v836
      %v952 = vpop.f32.mrf.mxu0
      %v953 = vadd.f32 0.0, %v952
      %954 = vmatmul.f32.gmra.mxu0 %v839
      %v955 = vpop.f32.mrf.mxu0
      %v956 = vadd.f32 0.0, %v955
      %957 = vmatmul.f32.gmra.mxu0 %v842
      %v958 = vpop.f32.mrf.mxu0
      %v959 = vadd.f32 0.0, %v958
      %960 = vmatmul.f32.gmra.mxu0 %v845
      %v961 = vpop.f32.mrf.mxu0
      %v962 = vadd.f32 0.0, %v961
      %963 = vmatmul.f32.gmra.mxu0 %v848
      %v964 = vpop.f32.mrf.mxu0
      %v965 = vadd.f32 0.0, %v964
      %966 = vmatmul.f32.gmra.mxu0 %v851
      %v967 = vpop.f32.mrf.mxu0
      %v968 = vadd.f32 0.0, %v967
      %969 = vmatmul.f32.gmra.mxu0 %v854
      %v970 = vpop.f32.mrf.mxu0
      %v971 = vadd.f32 0.0, %v970
      %972 = vmatmul.f32.gmra.mxu0 %v857
      %v973 = vpop.f32.mrf.mxu0
      %v974 = vadd.f32 0.0, %v973
      %975 = vmatmul.f32.gmra.mxu0 %v860
      %v976 = vpop.f32.mrf.mxu0
      %v977 = vadd.f32 0.0, %v976
      %978 = vmatmul.f32.gmra.mxu0 %v863
      %v979 = vpop.f32.mrf.mxu0
      %v980 = vadd.f32 0.0, %v979
      %981 = vmatmul.f32.gmra.mxu0 %v866
      %v982 = vpop.f32.mrf.mxu0
      %v983 = vadd.f32 0.0, %v982
      %984 = vmatmul.f32.gmra.mxu0 %v869
      %v985 = vpop.f32.mrf.mxu0
      %v986 = vadd.f32 0.0, %v985
      %987 = vdwg.mxu0
      %v989 = vperm.slane %v263, 0
      %v991 = vadd.f32 %v989, %v893
      %v992 = vadd.f32 %v989, %v896
      %v993 = vadd.f32 %v989, %v899
      %v994 = vadd.f32 %v989, %v902
      %v995 = vadd.f32 %v989, %v905
      %v996 = vadd.f32 %v989, %v908
      %v997 = vadd.f32 %v989, %v911
      %v998 = vadd.f32 %v989, %v914
      %v999 = vadd.f32 %v989, %v917
      %v1000 = vadd.f32 %v989, %v920
      %v1001 = vadd.f32 %v989, %v923
      %v1002 = vadd.f32 %v989, %v926
      %v1003 = vadd.f32 %v989, %v929
      %v1004 = vadd.f32 %v989, %v932
      %v1005 = vadd.f32 %v989, %v935
      %v1006 = vadd.f32 %v989, %v938
      %v1007 = vadd.f32 %v989, %v941
      %v1008 = vadd.f32 %v989, %v944
      %v1009 = vadd.f32 %v989, %v947
      %v1010 = vadd.f32 %v989, %v950
      %v1011 = vadd.f32 %v989, %v953
      %v1012 = vadd.f32 %v989, %v956
      %v1013 = vadd.f32 %v989, %v959
      %v1014 = vadd.f32 %v989, %v962
      %v1015 = vadd.f32 %v989, %v965
      %v1016 = vadd.f32 %v989, %v968
      %v1017 = vadd.f32 %v989, %v971
      %v1018 = vadd.f32 %v989, %v974
      %v1019 = vadd.f32 %v989, %v977
      %v1020 = vadd.f32 %v989, %v980
      %v1021 = vadd.f32 %v989, %v983
      %v1022 = vadd.f32 %v989, %v986
      %v1024 = vsel %vm780, %v778, 0
      %v1027 = vsel %vm780, %v779, 0
      %v1030 = vsel %vm871, %v260, 0
      %1032 = vmatpush.msra.mxu0 0.0
      %1033 = vmatpush.msra.mxu0 0.0
      %1034 = vmatpush.msra.mxu0 0.0
      %1035 = vmatpush.msra.mxu0 0.0
      %1036 = vmatpush.msra.mxu0 0.0
      %1037 = vmatpush.msra.mxu0 0.0
      %1038 = vmatpush.msra.mxu0 0.0
      %1039 = vmatpush.msra.mxu0 0.0
      %1040 = vmatpush.msra.mxu0 0.0
      %1041 = vmatpush.msra.mxu0 0.0
      %1042 = vmatpush.msra.mxu0 0.0
      %1043 = vmatpush.msra.mxu0 0.0
      %1044 = vmatpush.msra.mxu0 0.0
      %1045 = vmatpush.msra.mxu0 0.0
      %1046 = vmatpush.msra.mxu0 %v1030
      %1047 = vmatpush.msra.mxu0 %v259
      %1048 = vmatmul.f32.gmra.mxu0 %v788
      %v1049 = vpop.f32.mrf.mxu0
      %v1050 = vadd.f32 0.0, %v1049
      %1051 = vmatmul.f32.gmra.mxu0 %v791
      %v1052 = vpop.f32.mrf.mxu0
      %v1053 = vadd.f32 0.0, %v1052
      %1054 = vmatmul.f32.gmra.mxu0 %v782
      %v1055 = vpop.f32.mrf.mxu0
      %v1056 = vadd.f32 0.0, %v1055
      %1057 = vmatmul.f32.gmra.mxu0 %v785
      %v1058 = vpop.f32.mrf.mxu0
      %v1059 = vadd.f32 0.0, %v1058
      %1060 = vmatmul.f32.gmra.mxu0 %v794
      %v1061 = vpop.f32.mrf.mxu0
      %v1062 = vadd.f32 0.0, %v1061
      %1063 = vmatmul.f32.gmra.mxu0 %v797
      %v1064 = vpop.f32.mrf.mxu0
      %v1065 = vadd.f32 0.0, %v1064
      %1066 = vmatmul.f32.gmra.mxu0 %v800
      %v1067 = vpop.f32.mrf.mxu0
      %v1068 = vadd.f32 0.0, %v1067
      %1069 = vmatmul.f32.gmra.mxu0 %v803
      %v1070 = vpop.f32.mrf.mxu0
      %v1071 = vadd.f32 0.0, %v1070
      %1072 = vmatmul.f32.gmra.mxu0 %v806
      %v1073 = vpop.f32.mrf.mxu0
      %v1074 = vadd.f32 0.0, %v1073
      %1075 = vmatmul.f32.gmra.mxu0 %v809
      %v1076 = vpop.f32.mrf.mxu0
      %v1077 = vadd.f32 0.0, %v1076
      %1078 = vmatmul.f32.gmra.mxu0 %v812
      %v1079 = vpop.f32.mrf.mxu0
      %v1080 = vadd.f32 0.0, %v1079
      %1081 = vmatmul.f32.gmra.mxu0 %v815
      %v1082 = vpop.f32.mrf.mxu0
      %v1083 = vadd.f32 0.0, %v1082
      %1084 = vmatmul.f32.gmra.mxu0 %v818
      %v1085 = vpop.f32.mrf.mxu0
      %v1086 = vadd.f32 0.0, %v1085
      %1087 = vmatmul.f32.gmra.mxu0 %v821
      %v1088 = vpop.f32.mrf.mxu0
      %v1089 = vadd.f32 0.0, %v1088
      %1090 = vmatmul.f32.gmra.mxu0 %v824
      %v1091 = vpop.f32.mrf.mxu0
      %v1092 = vadd.f32 0.0, %v1091
      %1093 = vmatmul.f32.gmra.mxu0 %v827
      %v1094 = vpop.f32.mrf.mxu0
      %v1095 = vadd.f32 0.0, %v1094
      %1096 = vmatmul.f32.gmra.mxu0 %v830
      %v1097 = vpop.f32.mrf.mxu0
      %v1098 = vadd.f32 0.0, %v1097
      %1099 = vmatmul.f32.gmra.mxu0 %v833
      %v1100 = vpop.f32.mrf.mxu0
      %v1101 = vadd.f32 0.0, %v1100
      %1102 = vmatmul.f32.gmra.mxu0 %v836
      %v1103 = vpop.f32.mrf.mxu0
      %v1104 = vadd.f32 0.0, %v1103
      %1105 = vmatmul.f32.gmra.mxu0 %v839
      %v1106 = vpop.f32.mrf.mxu0
      %v1107 = vadd.f32 0.0, %v1106
      %1108 = vmatmul.f32.gmra.mxu0 %v842
      %v1109 = vpop.f32.mrf.mxu0
      %v1110 = vadd.f32 0.0, %v1109
      %1111 = vmatmul.f32.gmra.mxu0 %v845
      %v1112 = vpop.f32.mrf.mxu0
      %v1113 = vadd.f32 0.0, %v1112
      %1114 = vmatmul.f32.gmra.mxu0 %v848
      %v1115 = vpop.f32.mrf.mxu0
      %v1116 = vadd.f32 0.0, %v1115
      %1117 = vmatmul.f32.gmra.mxu0 %v851
      %v1118 = vpop.f32.mrf.mxu0
      %v1119 = vadd.f32 0.0, %v1118
      %1120 = vmatmul.f32.gmra.mxu0 %v854
      %v1121 = vpop.f32.mrf.mxu0
      %v1122 = vadd.f32 0.0, %v1121
      %1123 = vmatmul.f32.gmra.mxu0 %v857
      %v1124 = vpop.f32.mrf.mxu0
      %v1125 = vadd.f32 0.0, %v1124
      %1126 = vmatmul.f32.gmra.mxu0 %v860
      %v1127 = vpop.f32.mrf.mxu0
      %v1128 = vadd.f32 0.0, %v1127
      %1129 = vmatmul.f32.gmra.mxu0 %v863
      %v1130 = vpop.f32.mrf.mxu0
      %v1131 = vadd.f32 0.0, %v1130
      %1132 = vmatmul.f32.gmra.mxu0 %v866
      %v1133 = vpop.f32.mrf.mxu0
      %v1134 = vadd.f32 0.0, %v1133
      %1135 = vmatmul.f32.gmra.mxu0 %v869
      %v1136 = vpop.f32.mrf.mxu0
      %v1137 = vadd.f32 0.0, %v1136
      %1138 = vmatmul.f32.gmra.mxu0 %v1024
      %v1139 = vpop.f32.mrf.mxu0
      %v1140 = vadd.f32 0.0, %v1139
      %1141 = vmatmul.f32.gmra.mxu0 %v1027
      %v1142 = vpop.f32.mrf.mxu0
      %v1143 = vadd.f32 0.0, %v1142
      %1144 = vdwg.mxu0
      %v1145 = vadd.f32 %v991, %v1050
      %v1146 = vadd.f32 %v992, %v1053
      %v1147 = vadd.f32 %v993, %v1056
      %v1148 = vadd.f32 %v994, %v1059
      %v1149 = vadd.f32 %v995, %v1062
      %v1150 = vadd.f32 %v996, %v1065
      %v1151 = vadd.f32 %v997, %v1068
      %v1152 = vadd.f32 %v998, %v1071
      %v1153 = vadd.f32 %v999, %v1074
      %v1154 = vadd.f32 %v1000, %v1077
      %v1155 = vadd.f32 %v1001, %v1080
      %v1156 = vadd.f32 %v1002, %v1083
      %v1157 = vadd.f32 %v1003, %v1086
      %v1158 = vadd.f32 %v1004, %v1089
      %v1159 = vadd.f32 %v1005, %v1092
      %v1160 = vadd.f32 %v1006, %v1095
      %v1161 = vadd.f32 %v1007, %v1098
      %v1162 = vadd.f32 %v1008, %v1101
      %v1163 = vadd.f32 %v1009, %v1104
      %v1164 = vadd.f32 %v1010, %v1107
      %v1165 = vadd.f32 %v1011, %v1110
      %v1166 = vadd.f32 %v1012, %v1113
      %v1167 = vadd.f32 %v1013, %v1116
      %v1168 = vadd.f32 %v1014, %v1119
      %v1169 = vadd.f32 %v1015, %v1122
      %v1170 = vadd.f32 %v1016, %v1125
      %v1171 = vadd.f32 %v1017, %v1128
      %v1172 = vadd.f32 %v1018, %v1131
      %v1173 = vadd.f32 %v1019, %v1134
      %v1174 = vadd.f32 %v1020, %v1137
      %v1175 = vadd.f32 %v1021, %v1140
      %v1176 = vadd.f32 %v1022, %v1143
      %v1178 = vsel %vm871, %v262, 0
      %1180 = vmatpush.msra.mxu0 0.0
      %1181 = vmatpush.msra.mxu0 0.0
      %1182 = vmatpush.msra.mxu0 0.0
      %1183 = vmatpush.msra.mxu0 0.0
      %1184 = vmatpush.msra.mxu0 0.0
      %1185 = vmatpush.msra.mxu0 0.0
      %1186 = vmatpush.msra.mxu0 0.0
      %1187 = vmatpush.msra.mxu0 0.0
      %1188 = vmatpush.msra.mxu0 0.0
      %1189 = vmatpush.msra.mxu0 0.0
      %1190 = vmatpush.msra.mxu0 0.0
      %1191 = vmatpush.msra.mxu0 0.0
      %1192 = vmatpush.msra.mxu0 0.0
      %1193 = vmatpush.msra.mxu0 0.0
      %1194 = vmatpush.msra.mxu0 %v1178
      %1195 = vmatpush.msra.mxu0 %v261
      %1196 = vmatmul.f32.gmra.mxu0 %v782
      %v1197 = vpop.f32.mrf.mxu0
      %v1198 = vadd.f32 0.0, %v1197
      %1199 = vmatmul.f32.gmra.mxu0 %v785
      %v1200 = vpop.f32.mrf.mxu0
      %v1201 = vadd.f32 0.0, %v1200
      %1202 = vmatmul.f32.gmra.mxu0 %v794
      %v1203 = vpop.f32.mrf.mxu0
      %v1204 = vadd.f32 0.0, %v1203
      %1205 = vmatmul.f32.gmra.mxu0 %v797
      %v1206 = vpop.f32.mrf.mxu0
      %v1207 = vadd.f32 0.0, %v1206
      %1208 = vmatmul.f32.gmra.mxu0 %v800
      %v1209 = vpop.f32.mrf.mxu0
      %v1210 = vadd.f32 0.0, %v1209
      %1211 = vmatmul.f32.gmra.mxu0 %v803
      %v1212 = vpop.f32.mrf.mxu0
      %v1213 = vadd.f32 0.0, %v1212
      %1214 = vmatmul.f32.gmra.mxu0 %v806
      %v1215 = vpop.f32.mrf.mxu0
      %v1216 = vadd.f32 0.0, %v1215
      %1217 = vmatmul.f32.gmra.mxu0 %v809
      %v1218 = vpop.f32.mrf.mxu0
      %v1219 = vadd.f32 0.0, %v1218
      %1220 = vmatmul.f32.gmra.mxu0 %v812
      %v1221 = vpop.f32.mrf.mxu0
      %v1222 = vadd.f32 0.0, %v1221
      %1223 = vmatmul.f32.gmra.mxu0 %v815
      %v1224 = vpop.f32.mrf.mxu0
      %v1225 = vadd.f32 0.0, %v1224
      %1226 = vmatmul.f32.gmra.mxu0 %v818
      %v1227 = vpop.f32.mrf.mxu0
      %v1228 = vadd.f32 0.0, %v1227
      %1229 = vmatmul.f32.gmra.mxu0 %v821
      %v1230 = vpop.f32.mrf.mxu0
      %v1231 = vadd.f32 0.0, %v1230
      %1232 = vmatmul.f32.gmra.mxu0 %v824
      %v1233 = vpop.f32.mrf.mxu0
      %v1234 = vadd.f32 0.0, %v1233
      %1235 = vmatmul.f32.gmra.mxu0 %v827
      %v1236 = vpop.f32.mrf.mxu0
      %v1237 = vadd.f32 0.0, %v1236
      %1238 = vmatmul.f32.gmra.mxu0 %v830
      %v1239 = vpop.f32.mrf.mxu0
      %v1240 = vadd.f32 0.0, %v1239
      %1241 = vmatmul.f32.gmra.mxu0 %v833
      %v1242 = vpop.f32.mrf.mxu0
      %v1243 = vadd.f32 0.0, %v1242
      %1244 = vmatmul.f32.gmra.mxu0 %v836
      %v1245 = vpop.f32.mrf.mxu0
      %v1246 = vadd.f32 0.0, %v1245
      %1247 = vmatmul.f32.gmra.mxu0 %v839
      %v1248 = vpop.f32.mrf.mxu0
      %v1249 = vadd.f32 0.0, %v1248
      %1250 = vmatmul.f32.gmra.mxu0 %v842
      %v1251 = vpop.f32.mrf.mxu0
      %v1252 = vadd.f32 0.0, %v1251
      %1253 = vmatmul.f32.gmra.mxu0 %v845
      %v1254 = vpop.f32.mrf.mxu0
      %v1255 = vadd.f32 0.0, %v1254
      %1256 = vmatmul.f32.gmra.mxu0 %v848
      %v1257 = vpop.f32.mrf.mxu0
      %v1258 = vadd.f32 0.0, %v1257
      %1259 = vmatmul.f32.gmra.mxu0 %v851
      %v1260 = vpop.f32.mrf.mxu0
      %v1261 = vadd.f32 0.0, %v1260
      %1262 = vmatmul.f32.gmra.mxu0 %v854
      %v1263 = vpop.f32.mrf.mxu0
      %v1264 = vadd.f32 0.0, %v1263
      %1265 = vmatmul.f32.gmra.mxu0 %v857
      %v1266 = vpop.f32.mrf.mxu0
      %v1267 = vadd.f32 0.0, %v1266
      %1268 = vmatmul.f32.gmra.mxu0 %v860
      %v1269 = vpop.f32.mrf.mxu0
      %v1270 = vadd.f32 0.0, %v1269
      %1271 = vmatmul.f32.gmra.mxu0 %v863
      %v1272 = vpop.f32.mrf.mxu0
      %v1273 = vadd.f32 0.0, %v1272
      %1274 = vmatmul.f32.gmra.mxu0 %v866
      %v1275 = vpop.f32.mrf.mxu0
      %v1276 = vadd.f32 0.0, %v1275
      %1277 = vmatmul.f32.gmra.mxu0 %v869
      %v1278 = vpop.f32.mrf.mxu0
      %v1279 = vadd.f32 0.0, %v1278
      %1280 = vmatmul.f32.gmra.mxu0 %v1024
      %v1281 = vpop.f32.mrf.mxu0
      %v1282 = vadd.f32 0.0, %v1281
      %1283 = vmatmul.f32.gmra.mxu0 %v1027
      %v1284 = vpop.f32.mrf.mxu0
      %v1285 = vadd.f32 0.0, %v1284
      %1286 = vmatmul.f32.gmra.mxu0 %v866
      %v1287 = vpop.f32.mrf.mxu0
      %v1288 = vadd.f32 0.0, %v1287
      %1289 = vmatmul.f32.gmra.mxu0 %v869
      %v1290 = vpop.f32.mrf.mxu0
      %v1291 = vadd.f32 0.0, %v1290
      %1292 = vdwg.mxu0
      %v1293 = vadd.f32 %v1145, %v1198
      %v1294 = vadd.f32 %v1146, %v1201
      %v1295 = vadd.f32 %v1147, %v1204
      %v1296 = vadd.f32 %v1148, %v1207
      %v1297 = vadd.f32 %v1149, %v1210
      %v1298 = vadd.f32 %v1150, %v1213
      %v1299 = vadd.f32 %v1151, %v1216
      %v1300 = vadd.f32 %v1152, %v1219
      %v1301 = vadd.f32 %v1153, %v1222
      %v1302 = vadd.f32 %v1154, %v1225
      %v1303 = vadd.f32 %v1155, %v1228
      %v1304 = vadd.f32 %v1156, %v1231
      %v1305 = vadd.f32 %v1157, %v1234
      %v1306 = vadd.f32 %v1158, %v1237
      %v1307 = vadd.f32 %v1159, %v1240
      %v1308 = vadd.f32 %v1160, %v1243
      %v1309 = vadd.f32 %v1161, %v1246
      %v1310 = vadd.f32 %v1162, %v1249
      %v1311 = vadd.f32 %v1163, %v1252
      %v1312 = vadd.f32 %v1164, %v1255
      %v1313 = vadd.f32 %v1165, %v1258
      %v1314 = vadd.f32 %v1166, %v1261
      %v1315 = vadd.f32 %v1167, %v1264
      %v1316 = vadd.f32 %v1168, %v1267
      %v1317 = vadd.f32 %v1169, %v1270
      %v1318 = vadd.f32 %v1170, %v1273
      %v1319 = vadd.f32 %v1171, %v1276
      %v1320 = vadd.f32 %v1172, %v1279
      %v1321 = vadd.f32 %v1173, %v1282
      %v1322 = vadd.f32 %v1174, %v1285
      %v1323 = vadd.f32 %v1175, %v1288
      %v1324 = vadd.f32 %v1176, %v1291
      %v1325 = vsel %vm714, %v1293, 0.0
      %v1326 = vsel %vm714, %v1294, 0.0
      %v1327 = vadd.f32 %v1325, %v1326
      %v1328 = vsel %vm714, %v1295, 0.0
      %v1329 = vadd.f32 %v1327, %v1328
      %v1330 = vsel %vm714, %v1296, 0.0
      %v1331 = vadd.f32 %v1329, %v1330
      %v1332 = vsel %vm714, %v1297, 0.0
      %v1333 = vadd.f32 %v1331, %v1332
      %v1334 = vsel %vm714, %v1298, 0.0
      %v1335 = vadd.f32 %v1333, %v1334
      %v1336 = vsel %vm714, %v1299, 0.0
      %v1337 = vadd.f32 %v1335, %v1336
      %v1338 = vsel %vm714, %v1300, 0.0
      %v1339 = vadd.f32 %v1337, %v1338
      %v1340 = vsel %vm714, %v1301, 0.0
      %v1341 = vadd.f32 %v1339, %v1340
      %v1342 = vsel %vm714, %v1302, 0.0
      %v1343 = vadd.f32 %v1341, %v1342
      %v1344 = vsel %vm714, %v1303, 0.0
      %v1345 = vadd.f32 %v1343, %v1344
      %v1346 = vsel %vm714, %v1304, 0.0
      %v1347 = vadd.f32 %v1345, %v1346
      %v1348 = vsel %vm714, %v1305, 0.0
      %v1349 = vadd.f32 %v1347, %v1348
      %v1350 = vsel %vm714, %v1306, 0.0
      %v1351 = vadd.f32 %v1349, %v1350
      %v1352 = vsel %vm714, %v1307, 0.0
      %v1353 = vadd.f32 %v1351, %v1352
      %v1354 = vsel %vm714, %v1308, 0.0
      %v1355 = vadd.f32 %v1353, %v1354
      %v1356 = vsel %vm714, %v1309, 0.0
      %v1357 = vadd.f32 %v1355, %v1356
      %v1358 = vsel %vm714, %v1310, 0.0
      %v1359 = vadd.f32 %v1357, %v1358
      %v1360 = vsel %vm714, %v1311, 0.0
      %v1361 = vadd.f32 %v1359, %v1360
      %v1362 = vsel %vm714, %v1312, 0.0
      %v1363 = vadd.f32 %v1361, %v1362
      %v1364 = vsel %vm714, %v1313, 0.0
      %v1365 = vadd.f32 %v1363, %v1364
      %v1366 = vsel %vm714, %v1314, 0.0
      %v1367 = vadd.f32 %v1365, %v1366
      %v1368 = vsel %vm714, %v1315, 0.0
      %v1369 = vadd.f32 %v1367, %v1368
      %v1370 = vsel %vm714, %v1316, 0.0
      %v1371 = vadd.f32 %v1369, %v1370
      %v1372 = vsel %vm714, %v1317, 0.0
      %v1373 = vadd.f32 %v1371, %v1372
      %v1374 = vsel %vm714, %v1318, 0.0
      %v1375 = vadd.f32 %v1373, %v1374
      %v1376 = vsel %vm714, %v1319, 0.0
      %v1377 = vadd.f32 %v1375, %v1376
      %v1378 = vsel %vm714, %v1320, 0.0
      %v1379 = vadd.f32 %v1377, %v1378
      %v1380 = vsel %vm714, %v1321, 0.0
      %v1381 = vadd.f32 %v1379, %v1380
      %v1382 = vsel %vm714, %v1322, 0.0
      %v1383 = vadd.f32 %v1381, %v1382
      %v1384 = vsel %vm714, %v1323, 0.0
      %v1385 = vadd.f32 %v1383, %v1384
      %v1386 = vsel %vm714, %v1324, 0.0
      %v1387 = vadd.f32 %v1385, %v1386
      %v1388 = vrot.slane %v1387, 4
      %v1389 = vadd.f32 %v1387, %v1388
      %v1390 = vrot.slane %v1389, 2
      %v1391 = vadd.f32 %v1389, %v1390
      %v1392 = vrot.slane %v1391, 1
      %v1393 = vadd.f32 %v1391, %v1392
      %v1394 = vmul.f32 %v1393, 0.00390625
      %v1395 = vmul.f32 %v1293, %v1293
      %v1396 = vmul.f32 %v1294, %v1294
      %v1397 = vmul.f32 %v1295, %v1295
      %v1398 = vmul.f32 %v1296, %v1296
      %v1399 = vmul.f32 %v1297, %v1297
      %v1400 = vmul.f32 %v1298, %v1298
      %v1401 = vmul.f32 %v1299, %v1299
      %v1402 = vmul.f32 %v1300, %v1300
      %v1403 = vmul.f32 %v1301, %v1301
      %v1404 = vmul.f32 %v1302, %v1302
      %v1405 = vmul.f32 %v1303, %v1303
      %v1406 = vmul.f32 %v1304, %v1304
      %v1407 = vmul.f32 %v1305, %v1305
      %v1408 = vmul.f32 %v1306, %v1306
      %v1409 = vmul.f32 %v1307, %v1307
      %v1410 = vmul.f32 %v1308, %v1308
      %v1411 = vmul.f32 %v1309, %v1309
      %v1412 = vmul.f32 %v1310, %v1310
      %v1413 = vmul.f32 %v1311, %v1311
      %v1414 = vmul.f32 %v1312, %v1312
      %v1415 = vmul.f32 %v1313, %v1313
      %v1416 = vmul.f32 %v1314, %v1314
      %v1417 = vmul.f32 %v1315, %v1315
      %v1418 = vmul.f32 %v1316, %v1316
      %v1419 = vmul.f32 %v1317, %v1317
      %v1420 = vmul.f32 %v1318, %v1318
      %v1421 = vmul.f32 %v1319, %v1319
      %v1422 = vmul.f32 %v1320, %v1320
      %v1423 = vmul.f32 %v1321, %v1321
      %v1424 = vmul.f32 %v1322, %v1322
      %v1425 = vmul.f32 %v1323, %v1323
      %v1426 = vmul.f32 %v1324, %v1324
      %v1427 = vsel %vm714, %v1395, 0.0
      %v1428 = vsel %vm714, %v1396, 0.0
      %v1429 = vadd.f32 %v1427, %v1428
      %v1430 = vsel %vm714, %v1397, 0.0
      %v1431 = vadd.f32 %v1429, %v1430
      %v1432 = vsel %vm714, %v1398, 0.0
      %v1433 = vadd.f32 %v1431, %v1432
      %v1434 = vsel %vm714, %v1399, 0.0
      %v1435 = vadd.f32 %v1433, %v1434
      %v1436 = vsel %vm714, %v1400, 0.0
      %v1437 = vadd.f32 %v1435, %v1436
      %v1438 = vsel %vm714, %v1401, 0.0
      %v1439 = vadd.f32 %v1437, %v1438
      %v1440 = vsel %vm714, %v1402, 0.0
      %v1441 = vadd.f32 %v1439, %v1440
      %v1442 = vsel %vm714, %v1403, 0.0
      %v1443 = vadd.f32 %v1441, %v1442
      %v1444 = vsel %vm714, %v1404, 0.0
      %v1445 = vadd.f32 %v1443, %v1444
      %v1446 = vsel %vm714, %v1405, 0.0
      %v1447 = vadd.f32 %v1445, %v1446
      %v1448 = vsel %vm714, %v1406, 0.0
      %v1449 = vadd.f32 %v1447, %v1448
      %v1450 = vsel %vm714, %v1407, 0.0
      %v1451 = vadd.f32 %v1449, %v1450
      %v1452 = vsel %vm714, %v1408, 0.0
      %v1453 = vadd.f32 %v1451, %v1452
      %v1454 = vsel %vm714, %v1409, 0.0
      %v1455 = vadd.f32 %v1453, %v1454
      %v1456 = vsel %vm714, %v1410, 0.0
      %v1457 = vadd.f32 %v1455, %v1456
      %v1458 = vsel %vm714, %v1411, 0.0
      %v1459 = vadd.f32 %v1457, %v1458
      %v1460 = vsel %vm714, %v1412, 0.0
      %v1461 = vadd.f32 %v1459, %v1460
      %v1462 = vsel %vm714, %v1413, 0.0
      %v1463 = vadd.f32 %v1461, %v1462
      %v1464 = vsel %vm714, %v1414, 0.0
      %v1465 = vadd.f32 %v1463, %v1464
      %v1466 = vsel %vm714, %v1415, 0.0
      %v1467 = vadd.f32 %v1465, %v1466
      %v1468 = vsel %vm714, %v1416, 0.0
      %v1469 = vadd.f32 %v1467, %v1468
      %v1470 = vsel %vm714, %v1417, 0.0
      %v1471 = vadd.f32 %v1469, %v1470
      %v1472 = vsel %vm714, %v1418, 0.0
      %v1473 = vadd.f32 %v1471, %v1472
      %v1474 = vsel %vm714, %v1419, 0.0
      %v1475 = vadd.f32 %v1473, %v1474
      %v1476 = vsel %vm714, %v1420, 0.0
      %v1477 = vadd.f32 %v1475, %v1476
      %v1478 = vsel %vm714, %v1421, 0.0
      %v1479 = vadd.f32 %v1477, %v1478
      %v1480 = vsel %vm714, %v1422, 0.0
      %v1481 = vadd.f32 %v1479, %v1480
      %v1482 = vsel %vm714, %v1423, 0.0
      %v1483 = vadd.f32 %v1481, %v1482
      %v1484 = vsel %vm714, %v1424, 0.0
      %v1485 = vadd.f32 %v1483, %v1484
      %v1486 = vsel %vm714, %v1425, 0.0
      %v1487 = vadd.f32 %v1485, %v1486
      %v1488 = vsel %vm714, %v1426, 0.0
      %v1489 = vadd.f32 %v1487, %v1488
      %v1490 = vrot.slane %v1489, 4
      %v1491 = vadd.f32 %v1489, %v1490
      %v1492 = vrot.slane %v1491, 2
      %v1493 = vadd.f32 %v1491, %v1492
      %v1494 = vrot.slane %v1493, 1
      %v1495 = vadd.f32 %v1493, %v1494
      %v1496 = vmul.f32 %v1495, 0.00390625
      %v1497 = vmul.f32 %v1394, %v1394
      %v1498 = vsub.f32 %v1496, %v1497
      %v1499 = vmax.f32 %v1498, 0.0
      %v1500 = vsub.f32 %v1293, %v1394
      %v1501 = vsub.f32 %v1294, %v1394
      %v1502 = vsub.f32 %v1295, %v1394
      %v1503 = vsub.f32 %v1296, %v1394
      %v1504 = vsub.f32 %v1297, %v1394
      %v1505 = vsub.f32 %v1298, %v1394
      %v1506 = vsub.f32 %v1299, %v1394
      %v1507 = vsub.f32 %v1300, %v1394
      %v1508 = vsub.f32 %v1301, %v1394
      %v1509 = vsub.f32 %v1302, %v1394
      %v1510 = vsub.f32 %v1303, %v1394
      %v1511 = vsub.f32 %v1304, %v1394
      %v1512 = vsub.f32 %v1305, %v1394
      %v1513 = vsub.f32 %v1306, %v1394
      %v1514 = vsub.f32 %v1307, %v1394
      %v1515 = vsub.f32 %v1308, %v1394
      %v1516 = vsub.f32 %v1309, %v1394
      %v1517 = vsub.f32 %v1310, %v1394
      %v1518 = vsub.f32 %v1311, %v1394
      %v1519 = vsub.f32 %v1312, %v1394
      %v1520 = vsub.f32 %v1313, %v1394
      %v1521 = vsub.f32 %v1314, %v1394
      %v1522 = vsub.f32 %v1315, %v1394
      %v1523 = vsub.f32 %v1316, %v1394
      %v1524 = vsub.f32 %v1317, %v1394
      %v1525 = vsub.f32 %v1318, %v1394
      %v1526 = vsub.f32 %v1319, %v1394
      %v1527 = vsub.f32 %v1320, %v1394
      %v1528 = vsub.f32 %v1321, %v1394
      %v1529 = vsub.f32 %v1322, %v1394
      %v1530 = vsub.f32 %v1323, %v1394
      %v1531 = vsub.f32 %v1324, %v1394
      %v1532 = vadd.f32 %v1499, 1e-05
      %v1533 = vrsqrt.pop %v1532
      %v1534 = vmul.f32 %v1533, %v1532
      %v1535 = vmul.f32 %v1534, %v1533
      %v1536 = vmul.f32 0.5, %v1535
      %v1537 = vsub.f32 1.5, %v1536
      %v1538 = vmul.f32 %v1533, %v1537
      %vm1539 = vweird.f32 %v1532
      %vm1540 = vweird.f32 %v1533
      %vm1541 = vmor %vm1539, %vm1540
      %v1542 = vsel %vm1541, %v1533, %v1538
      %v1543 = vmul.f32 %v1500, %v1542
      %v1544 = vmul.f32 %v1501, %v1542
      %v1545 = vmul.f32 %v1502, %v1542
      %v1546 = vmul.f32 %v1503, %v1542
      %v1547 = vmul.f32 %v1504, %v1542
      %v1548 = vmul.f32 %v1505, %v1542
      %v1549 = vmul.f32 %v1506, %v1542
      %v1550 = vmul.f32 %v1507, %v1542
      %v1551 = vmul.f32 %v1508, %v1542
      %v1552 = vmul.f32 %v1509, %v1542
      %v1553 = vmul.f32 %v1510, %v1542
      %v1554 = vmul.f32 %v1511, %v1542
      %v1555 = vmul.f32 %v1512, %v1542
      %v1556 = vmul.f32 %v1513, %v1542
      %v1557 = vmul.f32 %v1514, %v1542
      %v1558 = vmul.f32 %v1515, %v1542
      %v1559 = vmul.f32 %v1516, %v1542
      %v1560 = vmul.f32 %v1517, %v1542
      %v1561 = vmul.f32 %v1518, %v1542
      %v1562 = vmul.f32 %v1519, %v1542
      %v1563 = vmul.f32 %v1520, %v1542
      %v1564 = vmul.f32 %v1521, %v1542
      %v1565 = vmul.f32 %v1522, %v1542
      %v1566 = vmul.f32 %v1523, %v1542
      %v1567 = vmul.f32 %v1524, %v1542
      %v1568 = vmul.f32 %v1525, %v1542
      %v1569 = vmul.f32 %v1526, %v1542
      %v1570 = vmul.f32 %v1527, %v1542
      %v1571 = vmul.f32 %v1528, %v1542
      %v1572 = vmul.f32 %v1529, %v1542
      %v1573 = vmul.f32 %v1530, %v1542
      %v1574 = vmul.f32 %v1531, %v1542
      %v1575 = vmax.f32 %v1543, 0.0
      %v1576 = vmax.f32 %v1544, 0.0
      %v1577 = vmax.f32 %v1545, 0.0
      %v1578 = vmax.f32 %v1546, 0.0
      %v1579 = vmax.f32 %v1547, 0.0
      %v1580 = vmax.f32 %v1548, 0.0
      %v1581 = vmax.f32 %v1549, 0.0
      %v1582 = vmax.f32 %v1550, 0.0
      %v1583 = vmax.f32 %v1551, 0.0
      %v1584 = vmax.f32 %v1552, 0.0
      %v1585 = vmax.f32 %v1553, 0.0
      %v1586 = vmax.f32 %v1554, 0.0
      %v1587 = vmax.f32 %v1555, 0.0
      %v1588 = vmax.f32 %v1556, 0.0
      %v1589 = vmax.f32 %v1557, 0.0
      %v1590 = vmax.f32 %v1558, 0.0
      %v1591 = vmax.f32 %v1559, 0.0
      %v1592 = vmax.f32 %v1560, 0.0
      %v1593 = vmax.f32 %v1561, 0.0
      %v1594 = vmax.f32 %v1562, 0.0
      %v1595 = vmax.f32 %v1563, 0.0
      %v1596 = vmax.f32 %v1564, 0.0
      %v1597 = vmax.f32 %v1565, 0.0
      %v1598 = vmax.f32 %v1566, 0.0
      %v1599 = vmax.f32 %v1567, 0.0
      %v1600 = vmax.f32 %v1568, 0.0
      %v1601 = vmax.f32 %v1569, 0.0
      %v1602 = vmax.f32 %v1570, 0.0
      %v1603 = vmax.f32 %v1571, 0.0
      %v1604 = vmax.f32 %v1572, 0.0
      %v1605 = vmax.f32 %v1573, 0.0
      %v1606 = vmax.f32 %v1574, 0.0
      %v1607 = vld [vmem:[%s3] sm:$0xff]
      %v1608 = vld [vmem:[%s3 + $0x8] sm:$0xf]
      %v1609 = vld [vmem:[%s3 + $0x10] sm:$0xff]
      %v1610 = vld [vmem:[%s3 + $0x18] sm:$0xf]
      %v1611 = vld [vmem:[%s3 + $0x20] sm:$0xff]
      %v1612 = vld [vmem:[%s3 + $0x28] sm:$0xf]
      %v1613 = vld [vmem:[%s4] sm:$0x1]
      %v1630 = vrot.slane %v1577, 1
      %v1631 = vrot.slane %v1575, 1
      %v1632 = vrot.slane %v1579, 1
      %v1633 = vrot.slane %v1581, 1
      %v1634 = vrot.slane %v1583, 1
      %v1635 = vrot.slane %v1585, 1
      %v1636 = vrot.slane %v1587, 1
      %v1637 = vrot.slane %v1589, 1
      %v1638 = vrot.slane %v1591, 1
      %v1639 = vrot.slane %v1593, 1
      %v1640 = vrot.slane %v1595, 1
      %v1641 = vrot.slane %v1597, 1
      %v1642 = vrot.slane %v1599, 1
      %v1643 = vrot.slane %v1601, 1
      %v1644 = vrot.slane %v1603, 1
      %v1645 = vrot.slane %v1605, 1
      %v1678 = vrot.slane %v1577, 7
      %v1679 = vrot.slane %v1578, 7
      %v1680 = vsel %vm328, %v1678, %v1679
      %v1681 = vrot.slane %v1575, 7
      %v1682 = vrot.slane %v1576, 7
      %v1683 = vsel %vm328, %v1681, %v1682
      %v1684 = vrot.slane %v1579, 7
      %v1685 = vrot.slane %v1580, 7
      %v1686 = vsel %vm328, %v1684, %v1685
      %v1687 = vrot.slane %v1581, 7
      %v1688 = vrot.slane %v1582, 7
      %v1689 = vsel %vm328, %v1687, %v1688
      %v1690 = vrot.slane %v1583, 7
      %v1691 = vrot.slane %v1584, 7
      %v1692 = vsel %vm328, %v1690, %v1691
      %v1693 = vrot.slane %v1585, 7
      %v1694 = vrot.slane %v1586, 7
      %v1695 = vsel %vm328, %v1693, %v1694
      %v1696 = vrot.slane %v1587, 7
      %v1697 = vrot.slane %v1588, 7
      %v1698 = vsel %vm328, %v1696, %v1697
      %v1699 = vrot.slane %v1589, 7
      %v1700 = vrot.slane %v1590, 7
      %v1701 = vsel %vm328, %v1699, %v1700
      %v1702 = vrot.slane %v1591, 7
      %v1703 = vrot.slane %v1592, 7
      %v1704 = vsel %vm328, %v1702, %v1703
      %v1705 = vrot.slane %v1593, 7
      %v1706 = vrot.slane %v1594, 7
      %v1707 = vsel %vm328, %v1705, %v1706
      %v1708 = vrot.slane %v1595, 7
      %v1709 = vrot.slane %v1596, 7
      %v1710 = vsel %vm328, %v1708, %v1709
      %v1711 = vrot.slane %v1597, 7
      %v1712 = vrot.slane %v1598, 7
      %v1713 = vsel %vm328, %v1711, %v1712
      %v1714 = vrot.slane %v1599, 7
      %v1715 = vrot.slane %v1600, 7
      %v1716 = vsel %vm328, %v1714, %v1715
      %v1717 = vrot.slane %v1601, 7
      %v1718 = vrot.slane %v1602, 7
      %v1719 = vsel %vm328, %v1717, %v1718
      %v1720 = vrot.slane %v1603, 7
      %v1721 = vrot.slane %v1604, 7
      %v1722 = vsel %vm328, %v1720, %v1721
      %v1723 = vrot.slane %v1605, 7
      %v1724 = vrot.slane %v1606, 7
      %v1725 = vsel %vm328, %v1723, %v1724
      %v1758 = vsel %vm328, %v1630, %v1678
      %v1759 = vsel %vm328, %v1631, %v1681
      %v1760 = vsel %vm328, %v1632, %v1684
      %v1761 = vsel %vm328, %v1633, %v1687
      %v1762 = vsel %vm328, %v1634, %v1690
      %v1763 = vsel %vm328, %v1635, %v1693
      %v1764 = vsel %vm328, %v1636, %v1696
      %v1765 = vsel %vm328, %v1637, %v1699
      %v1766 = vsel %vm328, %v1638, %v1702
      %v1767 = vsel %vm328, %v1639, %v1705
      %v1768 = vsel %vm328, %v1640, %v1708
      %v1769 = vsel %vm328, %v1641, %v1711
      %v1770 = vsel %vm328, %v1642, %v1714
      %v1771 = vsel %vm328, %v1643, %v1717
      %v1772 = vsel %vm328, %v1644, %v1720
      %v1773 = vsel %vm328, %v1645, %v1723
      %v1774 = vrot.slane %v1578, 1
      %v1775 = vsel %vm425, %v1630, %v1774
      %v1776 = vrot.slane %v1576, 1
      %v1777 = vsel %vm425, %v1631, %v1776
      %v1778 = vrot.slane %v1580, 1
      %v1779 = vsel %vm425, %v1632, %v1778
      %v1780 = vrot.slane %v1582, 1
      %v1781 = vsel %vm425, %v1633, %v1780
      %v1782 = vrot.slane %v1584, 1
      %v1783 = vsel %vm425, %v1634, %v1782
      %v1784 = vrot.slane %v1586, 1
      %v1785 = vsel %vm425, %v1635, %v1784
      %v1786 = vrot.slane %v1588, 1
      %v1787 = vsel %vm425, %v1636, %v1786
      %v1788 = vrot.slane %v1590, 1
      %v1789 = vsel %vm425, %v1637, %v1788
      %v1790 = vrot.slane %v1592, 1
      %v1791 = vsel %vm425, %v1638, %v1790
      %v1792 = vrot.slane %v1594, 1
      %v1793 = vsel %vm425, %v1639, %v1792
      %v1794 = vrot.slane %v1596, 1
      %v1795 = vsel %vm425, %v1640, %v1794
      %v1796 = vrot.slane %v1598, 1
      %v1797 = vsel %vm425, %v1641, %v1796
      %v1798 = vrot.slane %v1600, 1
      %v1799 = vsel %vm425, %v1642, %v1798
      %v1800 = vrot.slane %v1602, 1
      %v1801 = vsel %vm425, %v1643, %v1800
      %v1802 = vrot.slane %v1604, 1
      %v1803 = vsel %vm425, %v1644, %v1802
      %v1804 = vrot.slane %v1606, 1
      %v1805 = vsel %vm425, %v1645, %v1804
      %v1838 = vsel %vm425, %v1774, %v1679
      %v1839 = vsel %vm425, %v1776, %v1682
      %v1840 = vsel %vm425, %v1778, %v1685
      %v1841 = vsel %vm425, %v1780, %v1688
      %v1842 = vsel %vm425, %v1782, %v1691
      %v1843 = vsel %vm425, %v1784, %v1694
      %v1844 = vsel %vm425, %v1786, %v1697
      %v1845 = vsel %vm425, %v1788, %v1700
      %v1846 = vsel %vm425, %v1790, %v1703
      %v1847 = vsel %vm425, %v1792, %v1706
      %v1848 = vsel %vm425, %v1794, %v1709
      %v1849 = vsel %vm425, %v1796, %v1712
      %v1850 = vsel %vm425, %v1798, %v1715
      %v1851 = vsel %vm425, %v1800, %v1718
      %v1852 = vsel %vm425, %v1802, %v1721
      %v1853 = vsel %vm425, %v1804, %v1724
      %1854 = vrot.lane.b32.xlu0 %v1577, 4
      %v1855 = vpop.permute.xlu0 %1854
      %1856 = vrot.lane.b32.xlu0 %v1578, 4
      %v1857 = vpop.permute.xlu0 %1856
      %1858 = vrot.lane.b32.xlu0 %v1575, 4
      %v1859 = vpop.permute.xlu0 %1858
      %1860 = vrot.lane.b32.xlu0 %v1576, 4
      %v1861 = vpop.permute.xlu0 %1860
      %1862 = vrot.lane.b32.xlu0 %v1579, 4
      %v1863 = vpop.permute.xlu0 %1862
      %1864 = vrot.lane.b32.xlu0 %v1580, 4
      %v1865 = vpop.permute.xlu0 %1864
      %1866 = vrot.lane.b32.xlu0 %v1581, 4
      %v1867 = vpop.permute.xlu0 %1866
      %1868 = vrot.lane.b32.xlu0 %v1582, 4
      %v1869 = vpop.permute.xlu0 %1868
      %1870 = vrot.lane.b32.xlu0 %v1583, 4
      %v1871 = vpop.permute.xlu0 %1870
      %1872 = vrot.lane.b32.xlu0 %v1584, 4
      %v1873 = vpop.permute.xlu0 %1872
      %1874 = vrot.lane.b32.xlu0 %v1585, 4
      %v1875 = vpop.permute.xlu0 %1874
      %1876 = vrot.lane.b32.xlu0 %v1586, 4
      %v1877 = vpop.permute.xlu0 %1876
      %1878 = vrot.lane.b32.xlu0 %v1587, 4
      %v1879 = vpop.permute.xlu0 %1878
      %1880 = vrot.lane.b32.xlu0 %v1588, 4
      %v1881 = vpop.permute.xlu0 %1880
      %1882 = vrot.lane.b32.xlu0 %v1589, 4
      %v1883 = vpop.permute.xlu0 %1882
      %1884 = vrot.lane.b32.xlu0 %v1590, 4
      %v1885 = vpop.permute.xlu0 %1884
      %1886 = vrot.lane.b32.xlu0 %v1591, 4
      %v1887 = vpop.permute.xlu0 %1886
      %1888 = vrot.lane.b32.xlu0 %v1592, 4
      %v1889 = vpop.permute.xlu0 %1888
      %1890 = vrot.lane.b32.xlu0 %v1593, 4
      %v1891 = vpop.permute.xlu0 %1890
      %1892 = vrot.lane.b32.xlu0 %v1594, 4
      %v1893 = vpop.permute.xlu0 %1892
      %1894 = vrot.lane.b32.xlu0 %v1595, 4
      %v1895 = vpop.permute.xlu0 %1894
      %1896 = vrot.lane.b32.xlu0 %v1596, 4
      %v1897 = vpop.permute.xlu0 %1896
      %1898 = vrot.lane.b32.xlu0 %v1597, 4
      %v1899 = vpop.permute.xlu0 %1898
      %1900 = vrot.lane.b32.xlu0 %v1598, 4
      %v1901 = vpop.permute.xlu0 %1900
      %1902 = vrot.lane.b32.xlu0 %v1599, 4
      %v1903 = vpop.permute.xlu0 %1902
      %1904 = vrot.lane.b32.xlu0 %v1600, 4
      %v1905 = vpop.permute.xlu0 %1904
      %1906 = vrot.lane.b32.xlu0 %v1601, 4
      %v1907 = vpop.permute.xlu0 %1906
      %1908 = vrot.lane.b32.xlu0 %v1602, 4
      %v1909 = vpop.permute.xlu0 %1908
      %1910 = vrot.lane.b32.xlu0 %v1603, 4
      %v1911 = vpop.permute.xlu0 %1910
      %1912 = vrot.lane.b32.xlu0 %v1604, 4
      %v1913 = vpop.permute.xlu0 %1912
      %1914 = vrot.lane.b32.xlu0 %v1605, 4
      %v1915 = vpop.permute.xlu0 %1914
      %1916 = vrot.lane.b32.xlu0 %v1606, 4
      %v1917 = vpop.permute.xlu0 %1916
      %1966 = vrot.lane.b32.xlu0 %v1775, 8
      %v1967 = vpop.permute.xlu0 %1966
      %1968 = vrot.lane.b32.xlu0 %v1838, 8
      %v1969 = vpop.permute.xlu0 %1968
      %1970 = vrot.lane.b32.xlu0 %v1777, 8
      %v1971 = vpop.permute.xlu0 %1970
      %1972 = vrot.lane.b32.xlu0 %v1839, 8
      %v1973 = vpop.permute.xlu0 %1972
      %1974 = vrot.lane.b32.xlu0 %v1779, 8
      %v1975 = vpop.permute.xlu0 %1974
      %1976 = vrot.lane.b32.xlu0 %v1840, 8
      %v1977 = vpop.permute.xlu0 %1976
      %1978 = vrot.lane.b32.xlu0 %v1781, 8
      %v1979 = vpop.permute.xlu0 %1978
      %1980 = vrot.lane.b32.xlu0 %v1841, 8
      %v1981 = vpop.permute.xlu0 %1980
      %1982 = vrot.lane.b32.xlu0 %v1783, 8
      %v1983 = vpop.permute.xlu0 %1982
      %1984 = vrot.lane.b32.xlu0 %v1842, 8
      %v1985 = vpop.permute.xlu0 %1984
      %1986 = vrot.lane.b32.xlu0 %v1785, 8
      %v1987 = vpop.permute.xlu0 %1986
      %1988 = vrot.lane.b32.xlu0 %v1843, 8
      %v1989 = vpop.permute.xlu0 %1988
      %1990 = vrot.lane.b32.xlu0 %v1787, 8
      %v1991 = vpop.permute.xlu0 %1990
      %1992 = vrot.lane.b32.xlu0 %v1844, 8
      %v1993 = vpop.permute.xlu0 %1992
      %1994 = vrot.lane.b32.xlu0 %v1789, 8
      %v1995 = vpop.permute.xlu0 %1994
      %1996 = vrot.lane.b32.xlu0 %v1845, 8
      %v1997 = vpop.permute.xlu0 %1996
      %1998 = vrot.lane.b32.xlu0 %v1791, 8
      %v1999 = vpop.permute.xlu0 %1998
      %2000 = vrot.lane.b32.xlu0 %v1846, 8
      %v2001 = vpop.permute.xlu0 %2000
      %2002 = vrot.lane.b32.xlu0 %v1793, 8
      %v2003 = vpop.permute.xlu0 %2002
      %2004 = vrot.lane.b32.xlu0 %v1847, 8
      %v2005 = vpop.permute.xlu0 %2004
      %2006 = vrot.lane.b32.xlu0 %v1795, 8
      %v2007 = vpop.permute.xlu0 %2006
      %2008 = vrot.lane.b32.xlu0 %v1848, 8
      %v2009 = vpop.permute.xlu0 %2008
      %2010 = vrot.lane.b32.xlu0 %v1797, 8
      %v2011 = vpop.permute.xlu0 %2010
      %2012 = vrot.lane.b32.xlu0 %v1849, 8
      %v2013 = vpop.permute.xlu0 %2012
      %2014 = vrot.lane.b32.xlu0 %v1799, 8
      %v2015 = vpop.permute.xlu0 %2014
      %2016 = vrot.lane.b32.xlu0 %v1850, 8
      %v2017 = vpop.permute.xlu0 %2016
      %2018 = vrot.lane.b32.xlu0 %v1801, 8
      %v2019 = vpop.permute.xlu0 %2018
      %2020 = vrot.lane.b32.xlu0 %v1851, 8
      %v2021 = vpop.permute.xlu0 %2020
      %2022 = vrot.lane.b32.xlu0 %v1803, 8
      %v2023 = vpop.permute.xlu0 %2022
      %2024 = vrot.lane.b32.xlu0 %v1852, 8
      %v2025 = vpop.permute.xlu0 %2024
      %2026 = vrot.lane.b32.xlu0 %v1805, 8
      %v2027 = vpop.permute.xlu0 %2026
      %2028 = vrot.lane.b32.xlu0 %v1853, 8
      %v2029 = vpop.permute.xlu0 %2028
      %v2062 = vsel %vm714, %v1758, %v1855
      %v2063 = vsel %vm714, %v1680, %v1857
      %v2064 = vsel %vm714, %v1759, %v1859
      %v2065 = vsel %vm714, %v1683, %v1861
      %v2066 = vsel %vm714, %v1760, %v1863
      %v2067 = vsel %vm714, %v1686, %v1865
      %v2068 = vsel %vm714, %v1761, %v1867
      %v2069 = vsel %vm714, %v1689, %v1869
      %v2070 = vsel %vm714, %v1762, %v1871
      %v2071 = vsel %vm714, %v1692, %v1873
      %v2072 = vsel %vm714, %v1763, %v1875
      %v2073 = vsel %vm714, %v1695, %v1877
      %v2074 = vsel %vm714, %v1764, %v1879
      %v2075 = vsel %vm714, %v1698, %v1881
      %v2076 = vsel %vm714, %v1765, %v1883
      %v2077 = vsel %vm714, %v1701, %v1885
      %v2078 = vsel %vm714, %v1766, %v1887
      %v2079 = vsel %vm714, %v1704, %v1889
      %v2080 = vsel %vm714, %v1767, %v1891
      %v2081 = vsel %vm714, %v1707, %v1893
      %v2082 = vsel %vm714, %v1768, %v1895
      %v2083 = vsel %vm714, %v1710, %v1897
      %v2084 = vsel %vm714, %v1769, %v1899
      %v2085 = vsel %vm714, %v1713, %v1901
      %v2086 = vsel %vm714, %v1770, %v1903
      %v2087 = vsel %vm714, %v1716, %v1905
      %v2088 = vsel %vm714, %v1771, %v1907
      %v2089 = vsel %vm714, %v1719, %v1909
      %v2090 = vsel %vm714, %v1772, %v1911
      %v2091 = vsel %vm714, %v1722, %v1913
      %v2092 = vsel %vm714, %v1773, %v1915
      %v2093 = vsel %vm714, %v1725, %v1917
      %v2094 = vsel %vm747, %v2062, %v1967
      %v2095 = vsel %vm747, %v2063, %v1969
      %v2096 = vsel %vm747, %v2064, %v1971
      %v2097 = vsel %vm747, %v2065, %v1973
      %v2098 = vsel %vm747, %v2066, %v1975
      %v2099 = vsel %vm747, %v2067, %v1977
      %v2100 = vsel %vm747, %v2068, %v1979
      %v2101 = vsel %vm747, %v2069, %v1981
      %v2102 = vsel %vm747, %v2070, %v1983
      %v2103 = vsel %vm747, %v2071, %v1985
      %v2104 = vsel %vm747, %v2072, %v1987
      %v2105 = vsel %vm747, %v2073, %v1989
      %v2106 = vsel %vm747, %v2074, %v1991
      %v2107 = vsel %vm747, %v2075, %v1993
      %v2108 = vsel %vm747, %v2076, %v1995
      %v2109 = vsel %vm747, %v2077, %v1997
      %v2110 = vsel %vm747, %v2078, %v1999
      %v2111 = vsel %vm747, %v2079, %v2001
      %v2112 = vsel %vm747, %v2080, %v2003
      %v2113 = vsel %vm747, %v2081, %v2005
      %v2114 = vsel %vm747, %v2082, %v2007
      %v2115 = vsel %vm747, %v2083, %v2009
      %v2116 = vsel %vm747, %v2084, %v2011
      %v2117 = vsel %vm747, %v2085, %v2013
      %v2118 = vsel %vm747, %v2086, %v2015
      %v2119 = vsel %vm747, %v2087, %v2017
      %v2120 = vsel %vm747, %v2088, %v2019
      %v2121 = vsel %vm747, %v2089, %v2021
      %v2122 = vsel %vm747, %v2090, %v2023
      %v2123 = vsel %vm747, %v2091, %v2025
      %v2124 = vsel %vm747, %v2092, %v2027
      %v2125 = vsel %vm747, %v2093, %v2029
      %v2127 = vsel %vm780, %v2094, 0
      %v2130 = vsel %vm780, %v2095, 0
      %v2133 = vsel %vm780, %v2096, 0
      %v2136 = vsel %vm780, %v2097, 0
      %v2139 = vsel %vm780, %v2098, 0
      %v2142 = vsel %vm780, %v2099, 0
      %v2145 = vsel %vm780, %v2100, 0
      %v2148 = vsel %vm780, %v2101, 0
      %v2151 = vsel %vm780, %v2102, 0
      %v2154 = vsel %vm780, %v2103, 0
      %v2157 = vsel %vm780, %v2104, 0
      %v2160 = vsel %vm780, %v2105, 0
      %v2163 = vsel %vm780, %v2106, 0
      %v2166 = vsel %vm780, %v2107, 0
      %v2169 = vsel %vm780, %v2108, 0
      %v2172 = vsel %vm780, %v2109, 0
      %v2175 = vsel %vm780, %v2110, 0
      %v2178 = vsel %vm780, %v2111, 0
      %v2181 = vsel %vm780, %v2112, 0
      %v2184 = vsel %vm780, %v2113, 0
      %v2187 = vsel %vm780, %v2114, 0
      %v2190 = vsel %vm780, %v2115, 0
      %v2193 = vsel %vm780, %v2116, 0
      %v2196 = vsel %vm780, %v2117, 0
      %v2199 = vsel %vm780, %v2118, 0
      %v2202 = vsel %vm780, %v2119, 0
      %v2205 = vsel %vm780, %v2120, 0
      %v2208 = vsel %vm780, %v2121, 0
      %v2211 = vsel %vm780, %v2122, 0
      %v2214 = vsel %vm780, %v2123, 0
      %v2217 = vsel %vm871, %v1608, 0
      %2219 = vmatpush.msra.mxu0 0.0
      %2220 = vmatpush.msra.mxu0 0.0
      %2221 = vmatpush.msra.mxu0 0.0
      %2222 = vmatpush.msra.mxu0 0.0
      %2223 = vmatpush.msra.mxu0 0.0
      %2224 = vmatpush.msra.mxu0 0.0
      %2225 = vmatpush.msra.mxu0 0.0
      %2226 = vmatpush.msra.mxu0 0.0
      %2227 = vmatpush.msra.mxu0 0.0
      %2228 = vmatpush.msra.mxu0 0.0
      %2229 = vmatpush.msra.mxu0 0.0
      %2230 = vmatpush.msra.mxu0 0.0
      %2231 = vmatpush.msra.mxu0 0.0
      %2232 = vmatpush.msra.mxu0 0.0
      %2233 = vmatpush.msra.mxu0 %v2217
      %2234 = vmatpush.msra.mxu0 %v1607
      %2235 = vmatmul.f32.gmra.mxu0 %v2127
      %v2236 = vpop.f32.mrf.mxu0
      %v2237 = vadd.f32 0.0, %v2236
      %2238 = vmatmul.f32.gmra.mxu0 %v2130
      %v2239 = vpop.f32.mrf.mxu0
      %v2240 = vadd.f32 0.0, %v2239
      %2241 = vmatmul.f32.gmra.mxu0 %v2133
      %v2242 = vpop.f32.mrf.mxu0
      %v2243 = vadd.f32 0.0, %v2242
      %2244 = vmatmul.f32.gmra.mxu0 %v2136
      %v2245 = vpop.f32.mrf.mxu0
      %v2246 = vadd.f32 0.0, %v2245
      %2247 = vmatmul.f32.gmra.mxu0 %v2127
      %v2248 = vpop.f32.mrf.mxu0
      %v2249 = vadd.f32 0.0, %v2248
      %2250 = vmatmul.f32.gmra.mxu0 %v2130
      %v2251 = vpop.f32.mrf.mxu0
      %v2252 = vadd.f32 0.0, %v2251
      %2253 = vmatmul.f32.gmra.mxu0 %v2139
      %v2254 = vpop.f32.mrf.mxu0
      %v2255 = vadd.f32 0.0, %v2254
      %2256 = vmatmul.f32.gmra.mxu0 %v2142
      %v2257 = vpop.f32.mrf.mxu0
      %v2258 = vadd.f32 0.0, %v2257
      %2259 = vmatmul.f32.gmra.mxu0 %v2145
      %v2260 = vpop.f32.mrf.mxu0
      %v2261 = vadd.f32 0.0, %v2260
      %2262 = vmatmul.f32.gmra.mxu0 %v2148
      %v2263 = vpop.f32.mrf.mxu0
      %v2264 = vadd.f32 0.0, %v2263
      %2265 = vmatmul.f32.gmra.mxu0 %v2151
      %v2266 = vpop.f32.mrf.mxu0
      %v2267 = vadd.f32 0.0, %v2266
      %2268 = vmatmul.f32.gmra.mxu0 %v2154
      %v2269 = vpop.f32.mrf.mxu0
      %v2270 = vadd.f32 0.0, %v2269
      %2271 = vmatmul.f32.gmra.mxu0 %v2157
      %v2272 = vpop.f32.mrf.mxu0
      %v2273 = vadd.f32 0.0, %v2272
      %2274 = vmatmul.f32.gmra.mxu0 %v2160
      %v2275 = vpop.f32.mrf.mxu0
      %v2276 = vadd.f32 0.0, %v2275
      %2277 = vmatmul.f32.gmra.mxu0 %v2163
      %v2278 = vpop.f32.mrf.mxu0
      %v2279 = vadd.f32 0.0, %v2278
      %2280 = vmatmul.f32.gmra.mxu0 %v2166
      %v2281 = vpop.f32.mrf.mxu0
      %v2282 = vadd.f32 0.0, %v2281
      %2283 = vmatmul.f32.gmra.mxu0 %v2169
      %v2284 = vpop.f32.mrf.mxu0
      %v2285 = vadd.f32 0.0, %v2284
      %2286 = vmatmul.f32.gmra.mxu0 %v2172
      %v2287 = vpop.f32.mrf.mxu0
      %v2288 = vadd.f32 0.0, %v2287
      %2289 = vmatmul.f32.gmra.mxu0 %v2175
      %v2290 = vpop.f32.mrf.mxu0
      %v2291 = vadd.f32 0.0, %v2290
      %2292 = vmatmul.f32.gmra.mxu0 %v2178
      %v2293 = vpop.f32.mrf.mxu0
      %v2294 = vadd.f32 0.0, %v2293
      %2295 = vmatmul.f32.gmra.mxu0 %v2181
      %v2296 = vpop.f32.mrf.mxu0
      %v2297 = vadd.f32 0.0, %v2296
      %2298 = vmatmul.f32.gmra.mxu0 %v2184
      %v2299 = vpop.f32.mrf.mxu0
      %v2300 = vadd.f32 0.0, %v2299
      %2301 = vmatmul.f32.gmra.mxu0 %v2187
      %v2302 = vpop.f32.mrf.mxu0
      %v2303 = vadd.f32 0.0, %v2302
      %2304 = vmatmul.f32.gmra.mxu0 %v2190
      %v2305 = vpop.f32.mrf.mxu0
      %v2306 = vadd.f32 0.0, %v2305
      %2307 = vmatmul.f32.gmra.mxu0 %v2193
      %v2308 = vpop.f32.mrf.mxu0
      %v2309 = vadd.f32 0.0, %v2308
      %2310 = vmatmul.f32.gmra.mxu0 %v2196
      %v2311 = vpop.f32.mrf.mxu0
      %v2312 = vadd.f32 0.0, %v2311
      %2313 = vmatmul.f32.gmra.mxu0 %v2199
      %v2314 = vpop.f32.mrf.mxu0
      %v2315 = vadd.f32 0.0, %v2314
      %2316 = vmatmul.f32.gmra.mxu0 %v2202
      %v2317 = vpop.f32.mrf.mxu0
      %v2318 = vadd.f32 0.0, %v2317
      %2319 = vmatmul.f32.gmra.mxu0 %v2205
      %v2320 = vpop.f32.mrf.mxu0
      %v2321 = vadd.f32 0.0, %v2320
      %2322 = vmatmul.f32.gmra.mxu0 %v2208
      %v2323 = vpop.f32.mrf.mxu0
      %v2324 = vadd.f32 0.0, %v2323
      %2325 = vmatmul.f32.gmra.mxu0 %v2211
      %v2326 = vpop.f32.mrf.mxu0
      %v2327 = vadd.f32 0.0, %v2326
      %2328 = vmatmul.f32.gmra.mxu0 %v2214
      %v2329 = vpop.f32.mrf.mxu0
      %v2330 = vadd.f32 0.0, %v2329
      %2331 = vdwg.mxu0
      %v2333 = vperm.slane %v1613, 0
      %v2335 = vadd.f32 %v2333, %v2237
      %v2336 = vadd.f32 %v2333, %v2240
      %v2337 = vadd.f32 %v2333, %v2243
      %v2338 = vadd.f32 %v2333, %v2246
      %v2339 = vadd.f32 %v2333, %v2249
      %v2340 = vadd.f32 %v2333, %v2252
      %v2341 = vadd.f32 %v2333, %v2255
      %v2342 = vadd.f32 %v2333, %v2258
      %v2343 = vadd.f32 %v2333, %v2261
      %v2344 = vadd.f32 %v2333, %v2264
      %v2345 = vadd.f32 %v2333, %v2267
      %v2346 = vadd.f32 %v2333, %v2270
      %v2347 = vadd.f32 %v2333, %v2273
      %v2348 = vadd.f32 %v2333, %v2276
      %v2349 = vadd.f32 %v2333, %v2279
      %v2350 = vadd.f32 %v2333, %v2282
      %v2351 = vadd.f32 %v2333, %v2285
      %v2352 = vadd.f32 %v2333, %v2288
      %v2353 = vadd.f32 %v2333, %v2291
      %v2354 = vadd.f32 %v2333, %v2294
      %v2355 = vadd.f32 %v2333, %v2297
      %v2356 = vadd.f32 %v2333, %v2300
      %v2357 = vadd.f32 %v2333, %v2303
      %v2358 = vadd.f32 %v2333, %v2306
      %v2359 = vadd.f32 %v2333, %v2309
      %v2360 = vadd.f32 %v2333, %v2312
      %v2361 = vadd.f32 %v2333, %v2315
      %v2362 = vadd.f32 %v2333, %v2318
      %v2363 = vadd.f32 %v2333, %v2321
      %v2364 = vadd.f32 %v2333, %v2324
      %v2365 = vadd.f32 %v2333, %v2327
      %v2366 = vadd.f32 %v2333, %v2330
      %v2368 = vsel %vm780, %v2124, 0
      %v2371 = vsel %vm780, %v2125, 0
      %v2374 = vsel %vm871, %v1610, 0
      %2376 = vmatpush.msra.mxu0 0.0
      %2377 = vmatpush.msra.mxu0 0.0
      %2378 = vmatpush.msra.mxu0 0.0
      %2379 = vmatpush.msra.mxu0 0.0
      %2380 = vmatpush.msra.mxu0 0.0
      %2381 = vmatpush.msra.mxu0 0.0
      %2382 = vmatpush.msra.mxu0 0.0
      %2383 = vmatpush.msra.mxu0 0.0
      %2384 = vmatpush.msra.mxu0 0.0
      %2385 = vmatpush.msra.mxu0 0.0
      %2386 = vmatpush.msra.mxu0 0.0
      %2387 = vmatpush.msra.mxu0 0.0
      %2388 = vmatpush.msra.mxu0 0.0
      %2389 = vmatpush.msra.mxu0 0.0
      %2390 = vmatpush.msra.mxu0 %v2374
      %2391 = vmatpush.msra.mxu0 %v1609
      %2392 = vmatmul.f32.gmra.mxu0 %v2133
      %v2393 = vpop.f32.mrf.mxu0
      %v2394 = vadd.f32 0.0, %v2393
      %2395 = vmatmul.f32.gmra.mxu0 %v2136
      %v2396 = vpop.f32.mrf.mxu0
      %v2397 = vadd.f32 0.0, %v2396
      %2398 = vmatmul.f32.gmra.mxu0 %v2127
      %v2399 = vpop.f32.mrf.mxu0
      %v2400 = vadd.f32 0.0, %v2399
      %2401 = vmatmul.f32.gmra.mxu0 %v2130
      %v2402 = vpop.f32.mrf.mxu0
      %v2403 = vadd.f32 0.0, %v2402
      %2404 = vmatmul.f32.gmra.mxu0 %v2139
      %v2405 = vpop.f32.mrf.mxu0
      %v2406 = vadd.f32 0.0, %v2405
      %2407 = vmatmul.f32.gmra.mxu0 %v2142
      %v2408 = vpop.f32.mrf.mxu0
      %v2409 = vadd.f32 0.0, %v2408
      %2410 = vmatmul.f32.gmra.mxu0 %v2145
      %v2411 = vpop.f32.mrf.mxu0
      %v2412 = vadd.f32 0.0, %v2411
      %2413 = vmatmul.f32.gmra.mxu0 %v2148
      %v2414 = vpop.f32.mrf.mxu0
      %v2415 = vadd.f32 0.0, %v2414
      %2416 = vmatmul.f32.gmra.mxu0 %v2151
      %v2417 = vpop.f32.mrf.mxu0
      %v2418 = vadd.f32 0.0, %v2417
      %2419 = vmatmul.f32.gmra.mxu0 %v2154
      %v2420 = vpop.f32.mrf.mxu0
      %v2421 = vadd.f32 0.0, %v2420
      %2422 = vmatmul.f32.gmra.mxu0 %v2157
      %v2423 = vpop.f32.mrf.mxu0
      %v2424 = vadd.f32 0.0, %v2423
      %2425 = vmatmul.f32.gmra.mxu0 %v2160
      %v2426 = vpop.f32.mrf.mxu0
      %v2427 = vadd.f32 0.0, %v2426
      %2428 = vmatmul.f32.gmra.mxu0 %v2163
      %v2429 = vpop.f32.mrf.mxu0
      %v2430 = vadd.f32 0.0, %v2429
      %2431 = vmatmul.f32.gmra.mxu0 %v2166
      %v2432 = vpop.f32.mrf.mxu0
      %v2433 = vadd.f32 0.0, %v2432
      %2434 = vmatmul.f32.gmra.mxu0 %v2169
      %v2435 = vpop.f32.mrf.mxu0
      %v2436 = vadd.f32 0.0, %v2435
      %2437 = vmatmul.f32.gmra.mxu0 %v2172
      %v2438 = vpop.f32.mrf.mxu0
      %v2439 = vadd.f32 0.0, %v2438
      %2440 = vmatmul.f32.gmra.mxu0 %v2175
      %v2441 = vpop.f32.mrf.mxu0
      %v2442 = vadd.f32 0.0, %v2441
      %2443 = vmatmul.f32.gmra.mxu0 %v2178
      %v2444 = vpop.f32.mrf.mxu0
      %v2445 = vadd.f32 0.0, %v2444
      %2446 = vmatmul.f32.gmra.mxu0 %v2181
      %v2447 = vpop.f32.mrf.mxu0
      %v2448 = vadd.f32 0.0, %v2447
      %2449 = vmatmul.f32.gmra.mxu0 %v2184
      %v2450 = vpop.f32.mrf.mxu0
      %v2451 = vadd.f32 0.0, %v2450
      %2452 = vmatmul.f32.gmra.mxu0 %v2187
      %v2453 = vpop.f32.mrf.mxu0
      %v2454 = vadd.f32 0.0, %v2453
      %2455 = vmatmul.f32.gmra.mxu0 %v2190
      %v2456 = vpop.f32.mrf.mxu0
      %v2457 = vadd.f32 0.0, %v2456
      %2458 = vmatmul.f32.gmra.mxu0 %v2193
      %v2459 = vpop.f32.mrf.mxu0
      %v2460 = vadd.f32 0.0, %v2459
      %2461 = vmatmul.f32.gmra.mxu0 %v2196
      %v2462 = vpop.f32.mrf.mxu0
      %v2463 = vadd.f32 0.0, %v2462
      %2464 = vmatmul.f32.gmra.mxu0 %v2199
      %v2465 = vpop.f32.mrf.mxu0
      %v2466 = vadd.f32 0.0, %v2465
      %2467 = vmatmul.f32.gmra.mxu0 %v2202
      %v2468 = vpop.f32.mrf.mxu0
      %v2469 = vadd.f32 0.0, %v2468
      %2470 = vmatmul.f32.gmra.mxu0 %v2205
      %v2471 = vpop.f32.mrf.mxu0
      %v2472 = vadd.f32 0.0, %v2471
      %2473 = vmatmul.f32.gmra.mxu0 %v2208
      %v2474 = vpop.f32.mrf.mxu0
      %v2475 = vadd.f32 0.0, %v2474
      %2476 = vmatmul.f32.gmra.mxu0 %v2211
      %v2477 = vpop.f32.mrf.mxu0
      %v2478 = vadd.f32 0.0, %v2477
      %2479 = vmatmul.f32.gmra.mxu0 %v2214
      %v2480 = vpop.f32.mrf.mxu0
      %v2481 = vadd.f32 0.0, %v2480
      %2482 = vmatmul.f32.gmra.mxu0 %v2368
      %v2483 = vpop.f32.mrf.mxu0
      %v2484 = vadd.f32 0.0, %v2483
      %2485 = vmatmul.f32.gmra.mxu0 %v2371
      %v2486 = vpop.f32.mrf.mxu0
      %v2487 = vadd.f32 0.0, %v2486
      %2488 = vdwg.mxu0
      %v2489 = vadd.f32 %v2335, %v2394
      %v2490 = vadd.f32 %v2336, %v2397
      %v2491 = vadd.f32 %v2337, %v2400
      %v2492 = vadd.f32 %v2338, %v2403
      %v2493 = vadd.f32 %v2339, %v2406
      %v2494 = vadd.f32 %v2340, %v2409
      %v2495 = vadd.f32 %v2341, %v2412
      %v2496 = vadd.f32 %v2342, %v2415
      %v2497 = vadd.f32 %v2343, %v2418
      %v2498 = vadd.f32 %v2344, %v2421
      %v2499 = vadd.f32 %v2345, %v2424
      %v2500 = vadd.f32 %v2346, %v2427
      %v2501 = vadd.f32 %v2347, %v2430
      %v2502 = vadd.f32 %v2348, %v2433
      %v2503 = vadd.f32 %v2349, %v2436
      %v2504 = vadd.f32 %v2350, %v2439
      %v2505 = vadd.f32 %v2351, %v2442
      %v2506 = vadd.f32 %v2352, %v2445
      %v2507 = vadd.f32 %v2353, %v2448
      %v2508 = vadd.f32 %v2354, %v2451
      %v2509 = vadd.f32 %v2355, %v2454
      %v2510 = vadd.f32 %v2356, %v2457
      %v2511 = vadd.f32 %v2357, %v2460
      %v2512 = vadd.f32 %v2358, %v2463
      %v2513 = vadd.f32 %v2359, %v2466
      %v2514 = vadd.f32 %v2360, %v2469
      %v2515 = vadd.f32 %v2361, %v2472
      %v2516 = vadd.f32 %v2362, %v2475
      %v2517 = vadd.f32 %v2363, %v2478
      %v2518 = vadd.f32 %v2364, %v2481
      %v2519 = vadd.f32 %v2365, %v2484
      %v2520 = vadd.f32 %v2366, %v2487
      %v2522 = vsel %vm871, %v1612, 0
      %2524 = vmatpush.msra.mxu0 0.0
      %2525 = vmatpush.msra.mxu0 0.0
      %2526 = vmatpush.msra.mxu0 0.0
      %2527 = vmatpush.msra.mxu0 0.0
      %2528 = vmatpush.msra.mxu0 0.0
      %2529 = vmatpush.msra.mxu0 0.0
      %2530 = vmatpush.msra.mxu0 0.0
      %2531 = vmatpush.msra.mxu0 0.0
      %2532 = vmatpush.msra.mxu0 0.0
      %2533 = vmatpush.msra.mxu0 0.0
      %2534 = vmatpush.msra.mxu0 0.0
      %2535 = vmatpush.msra.mxu0 0.0
      %2536 = vmatpush.msra.mxu0 0.0
      %2537 = vmatpush.msra.mxu0 0.0
      %2538 = vmatpush.msra.mxu0 %v2522
      %2539 = vmatpush.msra.mxu0 %v1611
      %2540 = vmatmul.f32.gmra.mxu0 %v2127
      %v2541 = vpop.f32.mrf.mxu0
      %v2542 = vadd.f32 0.0, %v2541
      %2543 = vmatmul.f32.gmra.mxu0 %v2130
      %v2544 = vpop.f32.mrf.mxu0
      %v2545 = vadd.f32 0.0, %v2544
      %2546 = vmatmul.f32.gmra.mxu0 %v2139
      %v2547 = vpop.f32.mrf.mxu0
      %v2548 = vadd.f32 0.0, %v2547
      %2549 = vmatmul.f32.gmra.mxu0 %v2142
      %v2550 = vpop.f32.mrf.mxu0
      %v2551 = vadd.f32 0.0, %v2550
      %2552 = vmatmul.f32.gmra.mxu0 %v2145
      %v2553 = vpop.f32.mrf.mxu0
      %v2554 = vadd.f32 0.0, %v2553
      %2555 = vmatmul.f32.gmra.mxu0 %v2148
      %v2556 = vpop.f32.mrf.mxu0
      %v2557 = vadd.f32 0.0, %v2556
      %2558 = vmatmul.f32.gmra.mxu0 %v2151
      %v2559 = vpop.f32.mrf.mxu0
      %v2560 = vadd.f32 0.0, %v2559
      %2561 = vmatmul.f32.gmra.mxu0 %v2154
      %v2562 = vpop.f32.mrf.mxu0
      %v2563 = vadd.f32 0.0, %v2562
      %2564 = vmatmul.f32.gmra.mxu0 %v2157
      %v2565 = vpop.f32.mrf.mxu0
      %v2566 = vadd.f32 0.0, %v2565
      %2567 = vmatmul.f32.gmra.mxu0 %v2160
      %v2568 = vpop.f32.mrf.mxu0
      %v2569 = vadd.f32 0.0, %v2568
      %2570 = vmatmul.f32.gmra.mxu0 %v2163
      %v2571 = vpop.f32.mrf.mxu0
      %v2572 = vadd.f32 0.0, %v2571
      %2573 = vmatmul.f32.gmra.mxu0 %v2166
      %v2574 = vpop.f32.mrf.mxu0
      %v2575 = vadd.f32 0.0, %v2574
      %2576 = vmatmul.f32.gmra.mxu0 %v2169
      %v2577 = vpop.f32.mrf.mxu0
      %v2578 = vadd.f32 0.0, %v2577
      %2579 = vmatmul.f32.gmra.mxu0 %v2172
      %v2580 = vpop.f32.mrf.mxu0
      %v2581 = vadd.f32 0.0, %v2580
      %2582 = vmatmul.f32.gmra.mxu0 %v2175
      %v2583 = vpop.f32.mrf.mxu0
      %v2584 = vadd.f32 0.0, %v2583
      %2585 = vmatmul.f32.gmra.mxu0 %v2178
      %v2586 = vpop.f32.mrf.mxu0
      %v2587 = vadd.f32 0.0, %v2586
      %2588 = vmatmul.f32.gmra.mxu0 %v2181
      %v2589 = vpop.f32.mrf.mxu0
      %v2590 = vadd.f32 0.0, %v2589
      %2591 = vmatmul.f32.gmra.mxu0 %v2184
      %v2592 = vpop.f32.mrf.mxu0
      %v2593 = vadd.f32 0.0, %v2592
      %2594 = vmatmul.f32.gmra.mxu0 %v2187
      %v2595 = vpop.f32.mrf.mxu0
      %v2596 = vadd.f32 0.0, %v2595
      %2597 = vmatmul.f32.gmra.mxu0 %v2190
      %v2598 = vpop.f32.mrf.mxu0
      %v2599 = vadd.f32 0.0, %v2598
      %2600 = vmatmul.f32.gmra.mxu0 %v2193
      %v2601 = vpop.f32.mrf.mxu0
      %v2602 = vadd.f32 0.0, %v2601
      %2603 = vmatmul.f32.gmra.mxu0 %v2196
      %v2604 = vpop.f32.mrf.mxu0
      %v2605 = vadd.f32 0.0, %v2604
      %2606 = vmatmul.f32.gmra.mxu0 %v2199
      %v2607 = vpop.f32.mrf.mxu0
      %v2608 = vadd.f32 0.0, %v2607
      %2609 = vmatmul.f32.gmra.mxu0 %v2202
      %v2610 = vpop.f32.mrf.mxu0
      %v2611 = vadd.f32 0.0, %v2610
      %2612 = vmatmul.f32.gmra.mxu0 %v2205
      %v2613 = vpop.f32.mrf.mxu0
      %v2614 = vadd.f32 0.0, %v2613
      %2615 = vmatmul.f32.gmra.mxu0 %v2208
      %v2616 = vpop.f32.mrf.mxu0
      %v2617 = vadd.f32 0.0, %v2616
      %2618 = vmatmul.f32.gmra.mxu0 %v2211
      %v2619 = vpop.f32.mrf.mxu0
      %v2620 = vadd.f32 0.0, %v2619
      %2621 = vmatmul.f32.gmra.mxu0 %v2214
      %v2622 = vpop.f32.mrf.mxu0
      %v2623 = vadd.f32 0.0, %v2622
      %2624 = vmatmul.f32.gmra.mxu0 %v2368
      %v2625 = vpop.f32.mrf.mxu0
      %v2626 = vadd.f32 0.0, %v2625
      %2627 = vmatmul.f32.gmra.mxu0 %v2371
      %v2628 = vpop.f32.mrf.mxu0
      %v2629 = vadd.f32 0.0, %v2628
      %2630 = vmatmul.f32.gmra.mxu0 %v2211
      %v2631 = vpop.f32.mrf.mxu0
      %v2632 = vadd.f32 0.0, %v2631
      %2633 = vmatmul.f32.gmra.mxu0 %v2214
      %v2634 = vpop.f32.mrf.mxu0
      %v2635 = vadd.f32 0.0, %v2634
      %2636 = vdwg.mxu0
      %v2637 = vadd.f32 %v2489, %v2542
      %v2638 = vadd.f32 %v2490, %v2545
      %v2639 = vadd.f32 %v2491, %v2548
      %v2640 = vadd.f32 %v2492, %v2551
      %v2641 = vadd.f32 %v2493, %v2554
      %v2642 = vadd.f32 %v2494, %v2557
      %v2643 = vadd.f32 %v2495, %v2560
      %v2644 = vadd.f32 %v2496, %v2563
      %v2645 = vadd.f32 %v2497, %v2566
      %v2646 = vadd.f32 %v2498, %v2569
      %v2647 = vadd.f32 %v2499, %v2572
      %v2648 = vadd.f32 %v2500, %v2575
      %v2649 = vadd.f32 %v2501, %v2578
      %v2650 = vadd.f32 %v2502, %v2581
      %v2651 = vadd.f32 %v2503, %v2584
      %v2652 = vadd.f32 %v2504, %v2587
      %v2653 = vadd.f32 %v2505, %v2590
      %v2654 = vadd.f32 %v2506, %v2593
      %v2655 = vadd.f32 %v2507, %v2596
      %v2656 = vadd.f32 %v2508, %v2599
      %v2657 = vadd.f32 %v2509, %v2602
      %v2658 = vadd.f32 %v2510, %v2605
      %v2659 = vadd.f32 %v2511, %v2608
      %v2660 = vadd.f32 %v2512, %v2611
      %v2661 = vadd.f32 %v2513, %v2614
      %v2662 = vadd.f32 %v2514, %v2617
      %v2663 = vadd.f32 %v2515, %v2620
      %v2664 = vadd.f32 %v2516, %v2623
      %v2665 = vadd.f32 %v2517, %v2626
      %v2666 = vadd.f32 %v2518, %v2629
      %v2667 = vadd.f32 %v2519, %v2632
      %v2668 = vadd.f32 %v2520, %v2635
      %v2669 = vsel %vm714, %v2637, 0.0
      %v2670 = vsel %vm714, %v2638, 0.0
      %v2671 = vadd.f32 %v2669, %v2670
      %v2672 = vsel %vm714, %v2639, 0.0
      %v2673 = vadd.f32 %v2671, %v2672
      %v2674 = vsel %vm714, %v2640, 0.0
      %v2675 = vadd.f32 %v2673, %v2674
      %v2676 = vsel %vm714, %v2641, 0.0
      %v2677 = vadd.f32 %v2675, %v2676
      %v2678 = vsel %vm714, %v2642, 0.0
      %v2679 = vadd.f32 %v2677, %v2678
      %v2680 = vsel %vm714, %v2643, 0.0
      %v2681 = vadd.f32 %v2679, %v2680
      %v2682 = vsel %vm714, %v2644, 0.0
      %v2683 = vadd.f32 %v2681, %v2682
      %v2684 = vsel %vm714, %v2645, 0.0
      %v2685 = vadd.f32 %v2683, %v2684
      %v2686 = vsel %vm714, %v2646, 0.0
      %v2687 = vadd.f32 %v2685, %v2686
      %v2688 = vsel %vm714, %v2647, 0.0
      %v2689 = vadd.f32 %v2687, %v2688
      %v2690 = vsel %vm714, %v2648, 0.0
      %v2691 = vadd.f32 %v2689, %v2690
      %v2692 = vsel %vm714, %v2649, 0.0
      %v2693 = vadd.f32 %v2691, %v2692
      %v2694 = vsel %vm714, %v2650, 0.0
      %v2695 = vadd.f32 %v2693, %v2694
      %v2696 = vsel %vm714, %v2651, 0.0
      %v2697 = vadd.f32 %v2695, %v2696
      %v2698 = vsel %vm714, %v2652, 0.0
      %v2699 = vadd.f32 %v2697, %v2698
      %v2700 = vsel %vm714, %v2653, 0.0
      %v2701 = vadd.f32 %v2699, %v2700
      %v2702 = vsel %vm714, %v2654, 0.0
      %v2703 = vadd.f32 %v2701, %v2702
      %v2704 = vsel %vm714, %v2655, 0.0
      %v2705 = vadd.f32 %v2703, %v2704
      %v2706 = vsel %vm714, %v2656, 0.0
      %v2707 = vadd.f32 %v2705, %v2706
      %v2708 = vsel %vm714, %v2657, 0.0
      %v2709 = vadd.f32 %v2707, %v2708
      %v2710 = vsel %vm714, %v2658, 0.0
      %v2711 = vadd.f32 %v2709, %v2710
      %v2712 = vsel %vm714, %v2659, 0.0
      %v2713 = vadd.f32 %v2711, %v2712
      %v2714 = vsel %vm714, %v2660, 0.0
      %v2715 = vadd.f32 %v2713, %v2714
      %v2716 = vsel %vm714, %v2661, 0.0
      %v2717 = vadd.f32 %v2715, %v2716
      %v2718 = vsel %vm714, %v2662, 0.0
      %v2719 = vadd.f32 %v2717, %v2718
      %v2720 = vsel %vm714, %v2663, 0.0
      %v2721 = vadd.f32 %v2719, %v2720
      %v2722 = vsel %vm714, %v2664, 0.0
      %v2723 = vadd.f32 %v2721, %v2722
      %v2724 = vsel %vm714, %v2665, 0.0
      %v2725 = vadd.f32 %v2723, %v2724
      %v2726 = vsel %vm714, %v2666, 0.0
      %v2727 = vadd.f32 %v2725, %v2726
      %v2728 = vsel %vm714, %v2667, 0.0
      %v2729 = vadd.f32 %v2727, %v2728
      %v2730 = vsel %vm714, %v2668, 0.0
      %v2731 = vadd.f32 %v2729, %v2730
      %v2732 = vrot.slane %v2731, 4
      %v2733 = vadd.f32 %v2731, %v2732
      %v2734 = vrot.slane %v2733, 2
      %v2735 = vadd.f32 %v2733, %v2734
      %v2736 = vrot.slane %v2735, 1
      %v2737 = vadd.f32 %v2735, %v2736
      %v2738 = vmul.f32 %v2737, 0.00390625
      %v2739 = vmul.f32 %v2637, %v2637
      %v2740 = vmul.f32 %v2638, %v2638
      %v2741 = vmul.f32 %v2639, %v2639
      %v2742 = vmul.f32 %v2640, %v2640
      %v2743 = vmul.f32 %v2641, %v2641
      %v2744 = vmul.f32 %v2642, %v2642
      %v2745 = vmul.f32 %v2643, %v2643
      %v2746 = vmul.f32 %v2644, %v2644
      %v2747 = vmul.f32 %v2645, %v2645
      %v2748 = vmul.f32 %v2646, %v2646
      %v2749 = vmul.f32 %v2647, %v2647
      %v2750 = vmul.f32 %v2648, %v2648
      %v2751 = vmul.f32 %v2649, %v2649
      %v2752 = vmul.f32 %v2650, %v2650
      %v2753 = vmul.f32 %v2651, %v2651
      %v2754 = vmul.f32 %v2652, %v2652
      %v2755 = vmul.f32 %v2653, %v2653
      %v2756 = vmul.f32 %v2654, %v2654
      %v2757 = vmul.f32 %v2655, %v2655
      %v2758 = vmul.f32 %v2656, %v2656
      %v2759 = vmul.f32 %v2657, %v2657
      %v2760 = vmul.f32 %v2658, %v2658
      %v2761 = vmul.f32 %v2659, %v2659
      %v2762 = vmul.f32 %v2660, %v2660
      %v2763 = vmul.f32 %v2661, %v2661
      %v2764 = vmul.f32 %v2662, %v2662
      %v2765 = vmul.f32 %v2663, %v2663
      %v2766 = vmul.f32 %v2664, %v2664
      %v2767 = vmul.f32 %v2665, %v2665
      %v2768 = vmul.f32 %v2666, %v2666
      %v2769 = vmul.f32 %v2667, %v2667
      %v2770 = vmul.f32 %v2668, %v2668
      %v2771 = vsel %vm714, %v2739, 0.0
      %v2772 = vsel %vm714, %v2740, 0.0
      %v2773 = vadd.f32 %v2771, %v2772
      %v2774 = vsel %vm714, %v2741, 0.0
      %v2775 = vadd.f32 %v2773, %v2774
      %v2776 = vsel %vm714, %v2742, 0.0
      %v2777 = vadd.f32 %v2775, %v2776
      %v2778 = vsel %vm714, %v2743, 0.0
      %v2779 = vadd.f32 %v2777, %v2778
      %v2780 = vsel %vm714, %v2744, 0.0
      %v2781 = vadd.f32 %v2779, %v2780
      %v2782 = vsel %vm714, %v2745, 0.0
      %v2783 = vadd.f32 %v2781, %v2782
      %v2784 = vsel %vm714, %v2746, 0.0
      %v2785 = vadd.f32 %v2783, %v2784
      %v2786 = vsel %vm714, %v2747, 0.0
      %v2787 = vadd.f32 %v2785, %v2786
      %v2788 = vsel %vm714, %v2748, 0.0
      %v2789 = vadd.f32 %v2787, %v2788
      %v2790 = vsel %vm714, %v2749, 0.0
      %v2791 = vadd.f32 %v2789, %v2790
      %v2792 = vsel %vm714, %v2750, 0.0
      %v2793 = vadd.f32 %v2791, %v2792
      %v2794 = vsel %vm714, %v2751, 0.0
      %v2795 = vadd.f32 %v2793, %v2794
      %v2796 = vsel %vm714, %v2752, 0.0
      %v2797 = vadd.f32 %v2795, %v2796
      %v2798 = vsel %vm714, %v2753, 0.0
      %v2799 = vadd.f32 %v2797, %v2798
      %v2800 = vsel %vm714, %v2754, 0.0
      %v2801 = vadd.f32 %v2799, %v2800
      %v2802 = vsel %vm714, %v2755, 0.0
      %v2803 = vadd.f32 %v2801, %v2802
      %v2804 = vsel %vm714, %v2756, 0.0
      %v2805 = vadd.f32 %v2803, %v2804
      %v2806 = vsel %vm714, %v2757, 0.0
      %v2807 = vadd.f32 %v2805, %v2806
      %v2808 = vsel %vm714, %v2758, 0.0
      %v2809 = vadd.f32 %v2807, %v2808
      %v2810 = vsel %vm714, %v2759, 0.0
      %v2811 = vadd.f32 %v2809, %v2810
      %v2812 = vsel %vm714, %v2760, 0.0
      %v2813 = vadd.f32 %v2811, %v2812
      %v2814 = vsel %vm714, %v2761, 0.0
      %v2815 = vadd.f32 %v2813, %v2814
      %v2816 = vsel %vm714, %v2762, 0.0
      %v2817 = vadd.f32 %v2815, %v2816
      %v2818 = vsel %vm714, %v2763, 0.0
      %v2819 = vadd.f32 %v2817, %v2818
      %v2820 = vsel %vm714, %v2764, 0.0
      %v2821 = vadd.f32 %v2819, %v2820
      %v2822 = vsel %vm714, %v2765, 0.0
      %v2823 = vadd.f32 %v2821, %v2822
      %v2824 = vsel %vm714, %v2766, 0.0
      %v2825 = vadd.f32 %v2823, %v2824
      %v2826 = vsel %vm714, %v2767, 0.0
      %v2827 = vadd.f32 %v2825, %v2826
      %v2828 = vsel %vm714, %v2768, 0.0
      %v2829 = vadd.f32 %v2827, %v2828
      %v2830 = vsel %vm714, %v2769, 0.0
      %v2831 = vadd.f32 %v2829, %v2830
      %v2832 = vsel %vm714, %v2770, 0.0
      %v2833 = vadd.f32 %v2831, %v2832
      %v2834 = vrot.slane %v2833, 4
      %v2835 = vadd.f32 %v2833, %v2834
      %v2836 = vrot.slane %v2835, 2
      %v2837 = vadd.f32 %v2835, %v2836
      %v2838 = vrot.slane %v2837, 1
      %v2839 = vadd.f32 %v2837, %v2838
      %v2840 = vmul.f32 %v2839, 0.00390625
      %v2841 = vmul.f32 %v2738, %v2738
      %v2842 = vsub.f32 %v2840, %v2841
      %v2843 = vmax.f32 %v2842, 0.0
      %v2844 = vsub.f32 %v2637, %v2738
      %v2845 = vsub.f32 %v2638, %v2738
      %v2846 = vsub.f32 %v2639, %v2738
      %v2847 = vsub.f32 %v2640, %v2738
      %v2848 = vsub.f32 %v2641, %v2738
      %v2849 = vsub.f32 %v2642, %v2738
      %v2850 = vsub.f32 %v2643, %v2738
      %v2851 = vsub.f32 %v2644, %v2738
      %v2852 = vsub.f32 %v2645, %v2738
      %v2853 = vsub.f32 %v2646, %v2738
      %v2854 = vsub.f32 %v2647, %v2738
      %v2855 = vsub.f32 %v2648, %v2738
      %v2856 = vsub.f32 %v2649, %v2738
      %v2857 = vsub.f32 %v2650, %v2738
      %v2858 = vsub.f32 %v2651, %v2738
      %v2859 = vsub.f32 %v2652, %v2738
      %v2860 = vsub.f32 %v2653, %v2738
      %v2861 = vsub.f32 %v2654, %v2738
      %v2862 = vsub.f32 %v2655, %v2738
      %v2863 = vsub.f32 %v2656, %v2738
      %v2864 = vsub.f32 %v2657, %v2738
      %v2865 = vsub.f32 %v2658, %v2738
      %v2866 = vsub.f32 %v2659, %v2738
      %v2867 = vsub.f32 %v2660, %v2738
      %v2868 = vsub.f32 %v2661, %v2738
      %v2869 = vsub.f32 %v2662, %v2738
      %v2870 = vsub.f32 %v2663, %v2738
      %v2871 = vsub.f32 %v2664, %v2738
      %v2872 = vsub.f32 %v2665, %v2738
      %v2873 = vsub.f32 %v2666, %v2738
      %v2874 = vsub.f32 %v2667, %v2738
      %v2875 = vsub.f32 %v2668, %v2738
      %v2876 = vadd.f32 %v2843, 1e-05
      %v2877 = vrsqrt.pop %v2876
      %v2878 = vmul.f32 %v2877, %v2876
      %v2879 = vmul.f32 %v2878, %v2877
      %v2880 = vmul.f32 0.5, %v2879
      %v2881 = vsub.f32 1.5, %v2880
      %v2882 = vmul.f32 %v2877, %v2881
      %vm2883 = vweird.f32 %v2876
      %vm2884 = vweird.f32 %v2877
      %vm2885 = vmor %vm2883, %vm2884
      %v2886 = vsel %vm2885, %v2877, %v2882
      %v2887 = vmul.f32 %v2844, %v2886
      %v2888 = vmul.f32 %v2845, %v2886
      %v2889 = vmul.f32 %v2846, %v2886
      %v2890 = vmul.f32 %v2847, %v2886
      %v2891 = vmul.f32 %v2848, %v2886
      %v2892 = vmul.f32 %v2849, %v2886
      %v2893 = vmul.f32 %v2850, %v2886
      %v2894 = vmul.f32 %v2851, %v2886
      %v2895 = vmul.f32 %v2852, %v2886
      %v2896 = vmul.f32 %v2853, %v2886
      %v2897 = vmul.f32 %v2854, %v2886
      %v2898 = vmul.f32 %v2855, %v2886
      %v2899 = vmul.f32 %v2856, %v2886
      %v2900 = vmul.f32 %v2857, %v2886
      %v2901 = vmul.f32 %v2858, %v2886
      %v2902 = vmul.f32 %v2859, %v2886
      %v2903 = vmul.f32 %v2860, %v2886
      %v2904 = vmul.f32 %v2861, %v2886
      %v2905 = vmul.f32 %v2862, %v2886
      %v2906 = vmul.f32 %v2863, %v2886
      %v2907 = vmul.f32 %v2864, %v2886
      %v2908 = vmul.f32 %v2865, %v2886
      %v2909 = vmul.f32 %v2866, %v2886
      %v2910 = vmul.f32 %v2867, %v2886
      %v2911 = vmul.f32 %v2868, %v2886
      %v2912 = vmul.f32 %v2869, %v2886
      %v2913 = vmul.f32 %v2870, %v2886
      %v2914 = vmul.f32 %v2871, %v2886
      %v2915 = vmul.f32 %v2872, %v2886
      %v2916 = vmul.f32 %v2873, %v2886
      %v2917 = vmul.f32 %v2874, %v2886
      %v2918 = vmul.f32 %v2875, %v2886
      %v2919 = vadd.f32 %v225, %v2887
      %v2920 = vadd.f32 %v226, %v2888
      %v2921 = vadd.f32 %v227, %v2889
      %v2922 = vadd.f32 %v228, %v2890
      %v2923 = vadd.f32 %v229, %v2891
      %v2924 = vadd.f32 %v230, %v2892
      %v2925 = vadd.f32 %v231, %v2893
      %v2926 = vadd.f32 %v232, %v2894
      %v2927 = vadd.f32 %v233, %v2895
      %v2928 = vadd.f32 %v234, %v2896
      %v2929 = vadd.f32 %v235, %v2897
      %v2930 = vadd.f32 %v236, %v2898
      %v2931 = vadd.f32 %v237, %v2899
      %v2932 = vadd.f32 %v238, %v2900
      %v2933 = vadd.f32 %v239, %v2901
      %v2934 = vadd.f32 %v240, %v2902
      %v2935 = vadd.f32 %v241, %v2903
      %v2936 = vadd.f32 %v242, %v2904
      %v2937 = vadd.f32 %v243, %v2905
      %v2938 = vadd.f32 %v244, %v2906
      %v2939 = vadd.f32 %v245, %v2907
      %v2940 = vadd.f32 %v246, %v2908
      %v2941 = vadd.f32 %v247, %v2909
      %v2942 = vadd.f32 %v248, %v2910
      %v2943 = vadd.f32 %v249, %v2911
      %v2944 = vadd.f32 %v250, %v2912
      %v2945 = vadd.f32 %v251, %v2913
      %v2946 = vadd.f32 %v252, %v2914
      %v2947 = vadd.f32 %v253, %v2915
      %v2948 = vadd.f32 %v254, %v2916
      %v2949 = vadd.f32 %v255, %v2917
      %v2950 = vadd.f32 %v256, %v2918
      %2951 = vst.msk [vmem:[%s224] sm:$0xff] %vm714, %v2919
      %2952 = vst.msk [vmem:[%s224 + $0x8] sm:$0xff] %vm714, %v2920
      %2953 = vst.msk [vmem:[%s224 + $0x10] sm:$0xff] %vm714, %v2921
      %2954 = vst.msk [vmem:[%s224 + $0x18] sm:$0xff] %vm714, %v2922
      %2955 = vst.msk [vmem:[%s224 + $0x20] sm:$0xff] %vm714, %v2923
      %2956 = vst.msk [vmem:[%s224 + $0x28] sm:$0xff] %vm714, %v2924
      %2957 = vst.msk [vmem:[%s224 + $0x30] sm:$0xff] %vm714, %v2925
      %2958 = vst.msk [vmem:[%s224 + $0x38] sm:$0xff] %vm714, %v2926
      %2959 = vst.msk [vmem:[%s224 + $0x40] sm:$0xff] %vm714, %v2927
      %2960 = vst.msk [vmem:[%s224 + $0x48] sm:$0xff] %vm714, %v2928
      %2961 = vst.msk [vmem:[%s224 + $0x50] sm:$0xff] %vm714, %v2929
      %2962 = vst.msk [vmem:[%s224 + $0x58] sm:$0xff] %vm714, %v2930
      %2963 = vst.msk [vmem:[%s224 + $0x60] sm:$0xff] %vm714, %v2931
      %2964 = vst.msk [vmem:[%s224 + $0x68] sm:$0xff] %vm714, %v2932
      %2965 = vst.msk [vmem:[%s224 + $0x70] sm:$0xff] %vm714, %v2933
      %2966 = vst.msk [vmem:[%s224 + $0x78] sm:$0xff] %vm714, %v2934
      %2967 = vst.msk [vmem:[%s224 + $0x80] sm:$0xff] %vm714, %v2935
      %2968 = vst.msk [vmem:[%s224 + $0x88] sm:$0xff] %vm714, %v2936
      %2969 = vst.msk [vmem:[%s224 + $0x90] sm:$0xff] %vm714, %v2937
      %2970 = vst.msk [vmem:[%s224 + $0x98] sm:$0xff] %vm714, %v2938
      %2971 = vst.msk [vmem:[%s224 + $0xa0] sm:$0xff] %vm714, %v2939
      %2972 = vst.msk [vmem:[%s224 + $0xa8] sm:$0xff] %vm714, %v2940
      %2973 = vst.msk [vmem:[%s224 + $0xb0] sm:$0xff] %vm714, %v2941
      %2974 = vst.msk [vmem:[%s224 + $0xb8] sm:$0xff] %vm714, %v2942
      %2975 = vst.msk [vmem:[%s224 + $0xc0] sm:$0xff] %vm714, %v2943
      %2976 = vst.msk [vmem:[%s224 + $0xc8] sm:$0xff] %vm714, %v2944
      %2977 = vst.msk [vmem:[%s224 + $0xd0] sm:$0xff] %vm714, %v2945
      %2978 = vst.msk [vmem:[%s224 + $0xd8] sm:$0xff] %vm714, %v2946
      %2979 = vst.msk [vmem:[%s224 + $0xe0] sm:$0xff] %vm714, %v2947
      %2980 = vst.msk [vmem:[%s224 + $0xe8] sm:$0xff] %vm714, %v2948
      %2981 = vst.msk [vmem:[%s224 + $0xf0] sm:$0xff] %vm714, %v2949
      %2982 = vst.msk [vmem:[%s224 + $0xf8] sm:$0xff] %vm714, %v2950
      %p2983 = scmp.lt.s32.totalorder %s16, 1
      %s2984 = scalar_select %p2983, %s16, 1
      %s2985 = smul.addr %s2984, 32
      %s2986 = smul.addr %s2985, 8
      %s2987 = scalar_lea.vmem %s5, %s2986
      // Predicated region
      $region41: #{tpu_custom_call.1} parent=39 // pred_check
        %p2988 = pneg %p144
      $region42: #{tpu_custom_call.1} parent=39 // pred_check_branch
        %2990 = sbr.rel (%p2988) target = $region44
      $region43: #{tpu_custom_call.1} parent=39 // pred_region
        _
      $region44: #{tpu_custom_call.1} parent=39 // pred_fallthru
        _
    $region40: #{tpu_custom_call.1} parent=5 // pred_fallthru
      _
    %p2991 = scmp.le.s32.totalorder 2, %s11
    // Predicated region
    $region45: #{tpu_custom_call.1} parent=5 // pred_check
      %p2992 = pneg %p2991
    $region46: #{tpu_custom_call.1} parent=5 // pred_check_branch
      %2994 = sbr.rel (%p2992) target = $region48
    $region47: #{tpu_custom_call.1} parent=5 // pred_region
      %s2995 = ssub.s32 %s11, 2
      // Predicated region
      $region49: #{tpu_custom_call.1} parent=47 // pred_check
        %p2996 = pneg %p150
      $region50: #{tpu_custom_call.1} parent=47 // pred_check_branch
        %2998 = sbr.rel (%p2996) target = $region52
      $region51: #{tpu_custom_call.1} parent=47 // pred_region
        %p2999 = scmp.lt.s32.totalorder %s17, 1
        %s3000 = scalar_select %p2999, %s17, 1
        %s3001 = smul.addr %s3000, 32
        %s3002 = smul.addr %s3001, 8
        %s3003 = scalar_lea.vmem %s5, %s3002
      $region52: #{tpu_custom_call.1} parent=47 // pred_fallthru
        _
    $region48: #{tpu_custom_call.1} parent=5 // pred_fallthru
      _
  $region6: #{tpu_custom_call.1} parent=0 // loop_footer
    %s15 = sadd.s32 1, %s11
  $region7: #{tpu_custom_call.1} parent=0 // loop_footer_branch
    %10 = sbr.rel target = $region3
  $region8: #{tpu_custom_call.1} parent=0 // loop_exit
    _

</llo_original>
